<compile_context>
chip_gen: v6e
topology: v6e:2x2x1
jax: 0.10.0
libtpu: 0.0.40
codegen_flags: <defaults>
</compile_context>

<pallas_src>
import functools

import jax
import jax.numpy as jnp
from jax.experimental import pallas as pl
from jax.experimental.pallas import tpu as pltpu


def _layer_norm(v, w, b, eps=1e-12):
    # TF-style LayerNorm (eps inside the sqrt), biased variance — matches the
    # custom LayerNorm in the PyTorch module. Keep statistics in f32.
    u = jnp.mean(v, axis=-1, keepdims=True)
    c = v - u
    s = jnp.mean(c * c, axis=-1, keepdims=True)
    return c * jax.lax.rsqrt(s + eps) * w + b


def resblock_stack_kernel(
    x_ref,        # (NB, L, D) f32
    ln1w_ref,     # (1, 1, D)  f32
    ln1b_ref,     # (1, 1, D)  f32
    wqkv_ref,     # (1, D, 3D) matmul dtype (q columns pre-scaled by 1/sqrt(hd))
    bqkv_ref,     # (1, 1, 3D) f32          (q part pre-scaled)
    wo_ref,       # (1, D, D)  matmul dtype
    bo_ref,       # (1, 1, D)  f32
    ln2w_ref,     # (1, 1, D)  f32
    ln2b_ref,     # (1, 1, D)  f32
    wfc_ref,      # (1, D, 4D) matmul dtype
    bfc_ref,      # (1, 1, 4D) f32
    wpr_ref,      # (1, 4D, D) matmul dtype
    bpr_ref,      # (1, 1, D)  f32
    o_ref,        # (NB, L, D)
    xacc_ref,     # (NB*L, D) f32 scratch — residual stream carried across layers
    *,
    num_heads: int,
):
    NB, L, D = x_ref.shape
    H = num_heads
    hd = D // H
    mm_dtype = wqkv_ref.dtype  # bf16 (or f32 for the reference-precision path)

    layer = pl.program_id(1)
    n_layers = pl.num_programs(1)

    # Load the input block into the f32 residual carry at the first layer only.
    @pl.when(layer == 0)
    def _():
        xacc_ref[...] = x_ref[...].reshape(NB * L, D).astype(jnp.float32)

    x = xacc_ref[...]                                              # (NB*L, D) f32

    # ---------------- attention branch ----------------
    h = _layer_norm(x, ln1w_ref[0], ln1b_ref[0])
    qkv = jnp.dot(h.astype(mm_dtype), wqkv_ref[0],
                  preferred_element_type=jnp.float32) + bqkv_ref[0]   # (NB*L, 3D)
    qkv = qkv.reshape(NB, L, 3 * D)

    # Head split: move heads onto the leading (batch) axis so attention is a
    # single batched contraction over all heads (no per-head matmuls/softmax).
    def heads(base):
        parts = [qkv[:, :, base + i * hd: base + (i + 1) * hd] for i in range(H)]
        return jnp.concatenate(parts, axis=0).astype(mm_dtype)       # (H*NB, L, hd)

    qh = heads(0)              # query scale already folded into w_qkv / b_qkv
    kh = heads(D)
    vh = heads(2 * D)

    s = jnp.einsum('bld,bmd->blm', qh, kh,
                   preferred_element_type=jnp.float32)                # (H*NB, L, L)
    s = s - jnp.max(s, axis=-1, keepdims=True)
    p = jnp.exp(s)
    p = p * pl.reciprocal(jnp.sum(p, axis=-1, keepdims=True), approx=True)
    ctx = jnp.einsum('blm,bmd->bld', p.astype(mm_dtype), vh,
                     preferred_element_type=jnp.float32)              # (H*NB, L, hd)

    # merge heads back to (NB, L, D), then to rows
    ctx = jnp.concatenate([ctx[i * NB:(i + 1) * NB] for i in range(H)], axis=-1)
    ctx = ctx.reshape(NB * L, D)

    attn = jnp.dot(ctx.astype(mm_dtype), wo_ref[0],
                   preferred_element_type=jnp.float32) + bo_ref[0]
    x = x + attn

    # ---------------- MLP branch ----------------
    h2 = _layer_norm(x, ln2w_ref[0], ln2b_ref[0])
    fc = jnp.dot(h2.astype(mm_dtype), wfc_ref[0],
                 preferred_element_type=jnp.float32) + bfc_ref[0]
    fc = fc * jax.nn.sigmoid(1.702 * fc)                              # QuickGELU (f32)
    mlp = jnp.dot(fc.astype(mm_dtype), wpr_ref[0],
                  preferred_element_type=jnp.float32) + bpr_ref[0]
    x = x + mlp

    xacc_ref[...] = x                                                 # carry to next layer

    @pl.when(layer == n_layers - 1)
    def _():
        o_ref[...] = x.reshape(NB, L, D).astype(o_ref.dtype)


def _choose_block_batch(N, L, D, num_heads, tile_budget_bytes=1 << 20):
    """Largest divisor of N fitting the tile budget, keeping >=2 grid steps."""
    per_elem = max(1, (16 * L * D + 3 * num_heads * L * L) * 4)
    target = max(1, min(N, tile_budget_bytes // per_elem))
    if N >= 2:
        target = max(1, min(target, N // 2))   # >=2 batch steps so both v7x TCs get work
    nb = 1
    for cand in range(1, target + 1):
        if N % cand == 0:
            nb = cand
    return nb


def _vmem_limit_bytes(param_vals, NB, L, D, num_heads):
    # Per-layer weights only (double-buffered by the pipeline), plus activations.
    layer_weight_bytes = sum(
        (int(p.size) // int(p.shape[0])) * p.dtype.itemsize for p in param_vals)
    rows = NB * L
    act_bytes = rows * 16 * D * 4 + num_heads * NB * L * L * 4 * 3
    io_bytes = 2 * 2 * NB * L * D * 4          # double-buffered x / o tiles
    scratch_bytes = rows * D * 4
    est = 2 * layer_weight_bytes + io_bytes + 2 * act_bytes + scratch_bytes + (4 << 20)
    return int(min(max(est, 32 << 20), 64 << 20))


_PARAM_ORDER = (
    "ln1_w", "ln1_b", "w_qkv_t", "b_qkv", "w_out_t", "b_out",
    "ln2_w", "ln2_b", "w_fc_t", "b_fc", "w_proj_t", "b_proj",
)
_MATMUL_KEYS = {"w_qkv_t", "w_out_t", "w_fc_t", "w_proj_t"}


def prepare_stacked_params(raw_layers, num_heads, matmul_dtype=jnp.bfloat16):
    """Fold the 1/sqrt(head_dim) query scale into w_qkv/b_qkv, cast matmul
    weights to the MXU dtype, and stack all layers along a leading axis.
    Matrices -> (num_layers, R, C); vectors -> (num_layers, 1, dim) f32."""
    D = raw_layers[0]["ln1_w"].shape[-1]
    hd = D // num_heads
    scale = 1.0 / float(hd) ** 0.5

    def one_layer(raw):
        w_qkv = raw["w_qkv_t"].astype(jnp.float32).at[:, :D].multiply(scale)
        b_qkv = raw["b_qkv"].astype(jnp.float32).reshape(-1).at[:D].multiply(scale)
        out = {}
        for k in _PARAM_ORDER:
            if k == "w_qkv_t":
                out[k] = w_qkv.astype(matmul_dtype)
            elif k == "b_qkv":
                out[k] = b_qkv.reshape(1, 3 * D)
            elif k in _MATMUL_KEYS:
                out[k] = raw[k].astype(matmul_dtype)
            else:
                out[k] = raw[k].astype(jnp.float32).reshape(1, -1)
        return out

    per_layer = [one_layer(r) for r in raw_layers]
    return {k: jnp.stack([p[k] for p in per_layer], axis=0) for k in _PARAM_ORDER}


def temporal_transformer_pallas(x_nld, stacked, num_heads, *, block_batch=None):
    """All layers in one pallas_call. x_nld: (N, L, D)."""
    N, L, D = x_nld.shape
    num_layers = int(stacked["w_qkv_t"].shape[0])
    NB = block_batch or _choose_block_batch(N, L, D, num_heads)
    assert N % NB == 0, "batch must be divisible by the batch block"

    param_vals = [stacked[k] for k in _PARAM_ORDER]

    x_map = lambda b, l: (b, 0, 0)      # activations: indexed by batch block only
    p_map = lambda b, l: (l, 0, 0)      # weights: indexed by layer

    in_specs = [pl.BlockSpec((NB, L, D), x_map)]
    in_specs += [pl.BlockSpec((1,) + p.shape[1:], p_map) for p in param_vals]

    kernel = functools.partial(resblock_stack_kernel, num_heads=num_heads)

    return pl.pallas_call(
        kernel,
        out_shape=jax.ShapeDtypeStruct((N, L, D), x_nld.dtype),
        grid_spec=pltpu.PrefetchScalarGridSpec(
            num_scalar_prefetch=0,
            grid=(N // NB, num_layers),
            in_specs=in_specs,
            out_specs=pl.BlockSpec((NB, L, D), x_map),
            scratch_shapes=[pltpu.VMEM((NB * L, D), jnp.float32)],
        ),
        compiler_params=pltpu.CompilerParams(
            dimension_semantics=("parallel", "arbitrary"),
            vmem_limit_bytes=_vmem_limit_bytes(param_vals, NB, L, D, num_heads),
        ),
    )(x_nld, *param_vals)


def temporal_transformer(x_lnd, raw_layer_params, num_heads, *,
                         matmul_dtype=jnp.bfloat16, block_batch=None):
    """x_lnd: (L, N, D) seq-first, like the PyTorch module. Returns (L, N, D)."""
    x = jnp.transpose(x_lnd, (1, 0, 2))           # -> (N, L, D) kernel layout
    stacked = prepare_stacked_params(raw_layer_params, num_heads, matmul_dtype)
    y = temporal_transformer_pallas(x, stacked, num_heads, block_batch=block_batch)
    return jnp.transpose(y, (1, 0, 2))            # -> (L, N, D)


# ---------------------------------------------------------------------------
# Pure-JAX reference (PyTorch semantics, f32) for the correctness check.
# ---------------------------------------------------------------------------
def reference_forward(x_lnd, layer_params, num_heads):
    x = jnp.transpose(x_lnd, (1, 0, 2))           # (N, L, D)
    N, L, D = x.shape
    hd = D // num_heads
    scale = 1.0 / float(hd) ** 0.5
    for p in layer_params:
        h = _layer_norm(x, p["ln1_w"], p["ln1_b"])
        qkv = h @ p["w_qkv_t"] + p["b_qkv"]
        q, k, v = qkv[..., :D] * scale, qkv[..., D:2 * D], qkv[..., 2 * D:]
        q = q.reshape(N, L, num_heads, hd)
        k = k.reshape(N, L, num_heads, hd)
        v = v.reshape(N, L, num_heads, hd)
        s = jnp.einsum("nlhd,nmhd->nhlm", q, k)
        a = jax.nn.softmax(s, axis=-1)
        o = jnp.einsum("nhlm,nmhd->nlhd", a, v).reshape(N, L, D)
        o = o @ p["w_out_t"] + p["b_out"]
        x = x + o
        h2 = _layer_norm(x, p["ln2_w"], p["ln2_b"])
        fc = h2 @ p["w_fc_t"] + p["b_fc"]
        fc = fc * jax.nn.sigmoid(1.702 * fc)
        x = x + (fc @ p["w_proj_t"] + p["b_proj"])
    return jnp.transpose(x, (1, 0, 2))


def init_layer_params(key, width):
    D = width
    ks = jax.random.split(key, 6)
    std = 0.02
    return {
        "ln1_w": jnp.ones((D,), jnp.float32),
        "ln1_b": jnp.zeros((D,), jnp.float32),
        # nn.MultiheadAttention: in_proj_weight (3D, D) -> store transposed (D, 3D)
        "w_qkv_t": std * jax.random.normal(ks[0], (D, 3 * D), jnp.float32),
        "b_qkv": std * jax.random.normal(ks[1], (3 * D,), jnp.float32),
        # out_proj (D, D) -> transposed (D, D)
        "w_out_t": std * jax.random.normal(ks[2], (D, D), jnp.float32),
        "b_out": jnp.zeros((D,), jnp.float32),
        "ln2_w": jnp.ones((D,), jnp.float32),
        "ln2_b": jnp.zeros((D,), jnp.float32),
        # c_fc (4D, D) -> transposed (D, 4D);  c_proj (D, 4D) -> transposed (4D, D)
        "w_fc_t": std * jax.random.normal(ks[3], (D, 4 * D), jnp.float32),
        "b_fc": std * jax.random.normal(ks[4], (4 * D,), jnp.float32),
        "w_proj_t": std * jax.random.normal(ks[5], (4 * D, D), jnp.float32),
        "b_proj": jnp.zeros((D,), jnp.float32),
    }


if __name__ == "__main__":
    # TemporalTransformer(width=32, layers=2, heads=4), attn_mask=None
    width, layers, heads = 32, 2, 4
    seq_len, batch = 8, 2

    key = jax.random.PRNGKey(0)
    kx, kp = jax.random.split(key)
    x = jax.random.normal(kx, (seq_len, batch, width), jnp.float32)  # (L, N, D)

    layer_keys = jax.random.split(kp, layers)
    raw_params = [init_layer_params(k, width) for k in layer_keys]

    ref = reference_forward(x, raw_params, heads)

    # f32-matmul path: tight check against the PyTorch-semantics reference.
    out_f32 = jax.block_until_ready(
        temporal_transformer(x, raw_params, heads, matmul_dtype=jnp.float32))
    assert out_f32.shape == (seq_len, batch, width)
    assert jnp.allclose(out_f32, ref, atol=1e-3, rtol=1e-3), "f32 kernel mismatch"

    # bf16-matmul path (performance config): looser bf16 tolerance.
    out_bf16 = jax.block_until_ready(
        temporal_transformer(x, raw_params, heads, matmul_dtype=jnp.bfloat16))
    assert out_bf16.shape == (seq_len, batch, width)
    assert jnp.allclose(out_bf16, ref, atol=1e-2, rtol=1e-2), "bf16 kernel mismatch"

    print("KERNEL_OK")
</pallas_src>

<mosaic_0001>
module attributes {stable_mosaic.version = 11 : i64} {
  func.func @resblock_stack_kernel(%arg0: i32, %arg1: i32, %arg2: memref<1x8x32xf32, #tpu.memory_space<vmem>>, %arg3: memref<1x1x32xf32, #tpu.memory_space<vmem>>, %arg4: memref<1x1x32xf32, #tpu.memory_space<vmem>>, %arg5: memref<1x32x96xf32, #tpu.memory_space<vmem>>, %arg6: memref<1x1x96xf32, #tpu.memory_space<vmem>>, %arg7: memref<1x32x32xf32, #tpu.memory_space<vmem>>, %arg8: memref<1x1x32xf32, #tpu.memory_space<vmem>>, %arg9: memref<1x1x32xf32, #tpu.memory_space<vmem>>, %arg10: memref<1x1x32xf32, #tpu.memory_space<vmem>>, %arg11: memref<1x32x128xf32, #tpu.memory_space<vmem>>, %arg12: memref<1x1x128xf32, #tpu.memory_space<vmem>>, %arg13: memref<1x128x32xf32, #tpu.memory_space<vmem>>, %arg14: memref<1x1x32xf32, #tpu.memory_space<vmem>>, %arg15: memref<1x8x32xf32, #tpu.memory_space<vmem>>, %arg16: memref<8x32xf32, #tpu.memory_space<vmem>>) attributes {dimension_semantics = [#tpu.dimension_semantics<parallel>, #tpu.dimension_semantics<arbitrary>], iteration_bounds = array<i64: 2, 2>, scalar_prefetch = 0 : i64, scratch_operands = 1 : i64, tpu.core_type = #tpu.core_type<tc>, window_params = [{transform_indices = @transform_0, window_bounds = array<i64: 1, 8, 32>}, {transform_indices = @transform_1, window_bounds = array<i64: 1, 1, 32>}, {transform_indices = @transform_2, window_bounds = array<i64: 1, 1, 32>}, {transform_indices = @transform_3, window_bounds = array<i64: 1, 32, 96>}, {transform_indices = @transform_4, window_bounds = array<i64: 1, 1, 96>}, {transform_indices = @transform_5, window_bounds = array<i64: 1, 32, 32>}, {transform_indices = @transform_6, window_bounds = array<i64: 1, 1, 32>}, {transform_indices = @transform_7, window_bounds = array<i64: 1, 1, 32>}, {transform_indices = @transform_8, window_bounds = array<i64: 1, 1, 32>}, {transform_indices = @transform_9, window_bounds = array<i64: 1, 32, 128>}, {transform_indices = @transform_10, window_bounds = array<i64: 1, 1, 128>}, {transform_indices = @transform_11, window_bounds = array<i64: 1, 128, 32>}, {transform_indices = @transform_12, window_bounds = array<i64: 1, 1, 32>}, {transform_indices = @transform_13, window_bounds = array<i64: 1, 8, 32>}]} {
    %c0_i32 = arith.constant 0 : i32
    %0 = arith.cmpi eq, %arg1, %c0_i32 : i32
    %1 = arith.extui %0 : i1 to i32
    %c0_i32_0 = arith.constant 0 : i32
    %2 = arith.cmpi ne, %1, %c0_i32_0 : i32
    scf.if %2 {
      %c0_60 = arith.constant 0 : index
      %c0_61 = arith.constant 0 : index
      %c0_62 = arith.constant 0 : index
      %128 = vector.load %arg2[%c0_60, %c0_61, %c0_62] : memref<1x8x32xf32, #tpu.memory_space<vmem>>, vector<1x8x32xf32>
      %129 = vector.shape_cast %128 : vector<1x8x32xf32> to vector<8x32xf32>
      %c0_63 = arith.constant 0 : index
      %c0_64 = arith.constant 0 : index
      %130 = vector.load %arg16[%c0_63, %c0_64] : memref<8x32xf32, #tpu.memory_space<vmem>>, vector<8x32xf32>
      tpu.vector_store %arg16[%c0_63, %c0_64], %129 {strides = array<i32>} : memref<8x32xf32, #tpu.memory_space<vmem>>, vector<8x32xf32>,
    } else {
    }
    %c0 = arith.constant 0 : index
    %c0_1 = arith.constant 0 : index
    %3 = vector.load %arg16[%c0, %c0_1] : memref<8x32xf32, #tpu.memory_space<vmem>>, vector<8x32xf32>
    %c0_2 = arith.constant 0 : index
    %c0_3 = arith.constant 0 : index
    %c0_4 = arith.constant 0 : index
    %4 = vector.load %arg3[%c0_2, %c0_3, %c0_4] : memref<1x1x32xf32, #tpu.memory_space<vmem>>, vector<1x1x32xf32>
    %5 = vector.shape_cast %4 : vector<1x1x32xf32> to vector<1x32xf32>
    %c0_5 = arith.constant 0 : index
    %c0_6 = arith.constant 0 : index
    %c0_7 = arith.constant 0 : index
    %6 = vector.load %arg4[%c0_5, %c0_6, %c0_7] : memref<1x1x32xf32, #tpu.memory_space<vmem>>, vector<1x1x32xf32>
    %7 = vector.shape_cast %6 : vector<1x1x32xf32> to vector<1x32xf32>
    %cst = arith.constant dense<0.000000e+00> : vector<8xf32>
    %8 = vector.multi_reduction <add>, %3, %cst [1] : vector<8x32xf32> to vector<8xf32>
    %9 = vector.shape_cast %8 : vector<8xf32> to vector<8x1xf32>
    %cst_8 = arith.constant 3.200000e+01 : f32
    %10 = vector.broadcast %cst_8 : f32 to vector<8x1xf32>
    %11 = arith.divf %9, %10 : vector<8x1xf32>
    %12 = vector.broadcast %11 : vector<8x1xf32> to vector<8x32xf32>
    %13 = arith.subf %3, %12 : vector<8x32xf32>
    %14 = arith.mulf %13, %13 : vector<8x32xf32>
    %cst_9 = arith.constant dense<0.000000e+00> : vector<8xf32>
    %15 = vector.multi_reduction <add>, %14, %cst_9 [1] : vector<8x32xf32> to vector<8xf32>
    %16 = vector.shape_cast %15 : vector<8xf32> to vector<8x1xf32>
    %cst_10 = arith.constant 3.200000e+01 : f32
    %17 = vector.broadcast %cst_10 : f32 to vector<8x1xf32>
    %18 = arith.divf %16, %17 : vector<8x1xf32>
    %cst_11 = arith.constant 9.99999996E-13 : f32
    %19 = vector.broadcast %cst_11 : f32 to vector<8x1xf32>
    %20 = arith.addf %18, %19 : vector<8x1xf32>
    %21 = math.rsqrt %20 : vector<8x1xf32>
    %22 = vector.broadcast %21 : vector<8x1xf32> to vector<8x32xf32>
    %23 = arith.mulf %13, %22 : vector<8x32xf32>
    %24 = vector.broadcast %5 : vector<1x32xf32> to vector<8x32xf32>
    %25 = arith.mulf %23, %24 : vector<8x32xf32>
    %26 = vector.broadcast %7 : vector<1x32xf32> to vector<8x32xf32>
    %27 = arith.addf %25, %26 : vector<8x32xf32>
    %c0_12 = arith.constant 0 : index
    %c0_13 = arith.constant 0 : index
    %c0_14 = arith.constant 0 : index
    %28 = vector.load %arg5[%c0_12, %c0_13, %c0_14] : memref<1x32x96xf32, #tpu.memory_space<vmem>>, vector<1x32x96xf32>
    %29 = vector.shape_cast %28 : vector<1x32x96xf32> to vector<32x96xf32>
    %cst_15 = arith.constant dense<0.000000e+00> : vector<8x96xf32>
    %30 = tpu.matmul %27, %29, %cst_15 {dimension_numbers = #tpu.dot_dimension_numbers<[1], [0], [0], [1], [0, 0, 1, 1], [], []>} : vector<8x32xf32>, vector<32x96xf32>, vector<8x96xf32> -> vector<8x96xf32>
    %c0_16 = arith.constant 0 : index
    %c0_17 = arith.constant 0 : index
    %c0_18 = arith.constant 0 : index
    %31 = vector.load %arg6[%c0_16, %c0_17, %c0_18] : memref<1x1x96xf32, #tpu.memory_space<vmem>>, vector<1x1x96xf32>
    %32 = vector.shape_cast %31 : vector<1x1x96xf32> to vector<1x96xf32>
    %33 = vector.broadcast %32 : vector<1x96xf32> to vector<8x96xf32>
    %34 = arith.addf %30, %33 : vector<8x96xf32>
    %35 = vector.shape_cast %34 : vector<8x96xf32> to vector<1x8x96xf32>
    %36 = vector.extract_strided_slice %35 {offsets = [0, 0, 0], sizes = [1, 8, 8], strides = [1, 1, 1]} : vector<1x8x96xf32> to vector<1x8x8xf32>
    %37 = vector.extract_strided_slice %35 {offsets = [0, 0, 8], sizes = [1, 8, 8], strides = [1, 1, 1]} : vector<1x8x96xf32> to vector<1x8x8xf32>
    %38 = vector.extract_strided_slice %35 {offsets = [0, 0, 16], sizes = [1, 8, 8], strides = [1, 1, 1]} : vector<1x8x96xf32> to vector<1x8x8xf32>
    %39 = vector.extract_strided_slice %35 {offsets = [0, 0, 24], sizes = [1, 8, 8], strides = [1, 1, 1]} : vector<1x8x96xf32> to vector<1x8x8xf32>
    %40 = tpu.concatenate %36, %37, %38, %39 in 0 : vector<1x8x8xf32>, vector<1x8x8xf32>, vector<1x8x8xf32>, vector<1x8x8xf32> -> vector<4x8x8xf32>
    %41 = vector.extract_strided_slice %35 {offsets = [0, 0, 32], sizes = [1, 8, 8], strides = [1, 1, 1]} : vector<1x8x96xf32> to vector<1x8x8xf32>
    %42 = vector.extract_strided_slice %35 {offsets = [0, 0, 40], sizes = [1, 8, 8], strides = [1, 1, 1]} : vector<1x8x96xf32> to vector<1x8x8xf32>
    %43 = vector.extract_strided_slice %35 {offsets = [0, 0, 48], sizes = [1, 8, 8], strides = [1, 1, 1]} : vector<1x8x96xf32> to vector<1x8x8xf32>
    %44 = vector.extract_strided_slice %35 {offsets = [0, 0, 56], sizes = [1, 8, 8], strides = [1, 1, 1]} : vector<1x8x96xf32> to vector<1x8x8xf32>
    %45 = tpu.concatenate %41, %42, %43, %44 in 0 : vector<1x8x8xf32>, vector<1x8x8xf32>, vector<1x8x8xf32>, vector<1x8x8xf32> -> vector<4x8x8xf32>
    %46 = vector.extract_strided_slice %35 {offsets = [0, 0, 64], sizes = [1, 8, 8], strides = [1, 1, 1]} : vector<1x8x96xf32> to vector<1x8x8xf32>
    %47 = vector.extract_strided_slice %35 {offsets = [0, 0, 72], sizes = [1, 8, 8], strides = [1, 1, 1]} : vector<1x8x96xf32> to vector<1x8x8xf32>
    %48 = vector.extract_strided_slice %35 {offsets = [0, 0, 80], sizes = [1, 8, 8], strides = [1, 1, 1]} : vector<1x8x96xf32> to vector<1x8x8xf32>
    %49 = vector.extract_strided_slice %35 {offsets = [0, 0, 88], sizes = [1, 8, 8], strides = [1, 1, 1]} : vector<1x8x96xf32> to vector<1x8x8xf32>
    %50 = tpu.concatenate %46, %47, %48, %49 in 0 : vector<1x8x8xf32>, vector<1x8x8xf32>, vector<1x8x8xf32>, vector<1x8x8xf32> -> vector<4x8x8xf32>
    "tpu.trace_start"() <{level = 10 : i32, message = "bld,bmd->blm"}> : () -> ()
    %cst_19 = arith.constant dense<0.000000e+00> : vector<4x8x8xf32>
    %51 = tpu.matmul %40, %45, %cst_19 {dimension_numbers = #tpu.dot_dimension_numbers<[2], [2], [1], [1], [0, 0, 0, 1, 1, 1], [0], [0]>} : vector<4x8x8xf32>, vector<4x8x8xf32>, vector<4x8x8xf32> -> vector<4x8x8xf32>
    "tpu.trace_stop"() : () -> ()
    %cst_20 = arith.constant dense<0xFF800000> : vector<4x8xf32>
    %52 = vector.multi_reduction <maximumf>, %51, %cst_20 [2] : vector<4x8x8xf32> to vector<4x8xf32>
    %53 = vector.shape_cast %52 : vector<4x8xf32> to vector<4x8x1xf32>
    %54 = vector.broadcast %53 : vector<4x8x1xf32> to vector<4x8x8xf32>
    %55 = arith.subf %51, %54 : vector<4x8x8xf32>
    %56 = math.exp %55 : vector<4x8x8xf32>
    %cst_21 = arith.constant dense<0.000000e+00> : vector<4x8xf32>
    %57 = vector.multi_reduction <add>, %56, %cst_21 [2] : vector<4x8x8xf32> to vector<4x8xf32>
    %58 = vector.shape_cast %57 : vector<4x8xf32> to vector<4x8x1xf32>
    %59 = tpu.reciprocal %58 {approx = true} : vector<4x8x1xf32> -> vector<4x8x1xf32>
    %60 = vector.broadcast %59 : vector<4x8x1xf32> to vector<4x8x8xf32>
    %61 = arith.mulf %56, %60 : vector<4x8x8xf32>
    "tpu.trace_start"() <{level = 10 : i32, message = "blm,bmd->bld"}> : () -> ()
    %cst_22 = arith.constant dense<0.000000e+00> : vector<4x8x8xf32>
    %62 = tpu.matmul %61, %50, %cst_22 {dimension_numbers = #tpu.dot_dimension_numbers<[2], [1], [1], [2], [0, 0, 0, 1, 1, 2], [0], [0]>} : vector<4x8x8xf32>, vector<4x8x8xf32>, vector<4x8x8xf32> -> vector<4x8x8xf32>
    "tpu.trace_stop"() : () -> ()
    %63 = vector.extract_strided_slice %62 {offsets = [0, 0, 0], sizes = [1, 8, 8], strides = [1, 1, 1]} : vector<4x8x8xf32> to vector<1x8x8xf32>
    %64 = vector.extract_strided_slice %62 {offsets = [1, 0, 0], sizes = [1, 8, 8], strides = [1, 1, 1]} : vector<4x8x8xf32> to vector<1x8x8xf32>
    %65 = vector.extract_strided_slice %62 {offsets = [2, 0, 0], sizes = [1, 8, 8], strides = [1, 1, 1]} : vector<4x8x8xf32> to vector<1x8x8xf32>
    %66 = vector.extract_strided_slice %62 {offsets = [3, 0, 0], sizes = [1, 8, 8], strides = [1, 1, 1]} : vector<4x8x8xf32> to vector<1x8x8xf32>
    %67 = tpu.concatenate %63, %64, %65, %66 in 2 : vector<1x8x8xf32>, vector<1x8x8xf32>, vector<1x8x8xf32>, vector<1x8x8xf32> -> vector<1x8x32xf32>
    %68 = vector.shape_cast %67 : vector<1x8x32xf32> to vector<8x32xf32>
    %c0_23 = arith.constant 0 : index
    %c0_24 = arith.constant 0 : index
    %c0_25 = arith.constant 0 : index
    %69 = vector.load %arg7[%c0_23, %c0_24, %c0_25] : memref<1x32x32xf32, #tpu.memory_space<vmem>>, vector<1x32x32xf32>
    %70 = vector.shape_cast %69 : vector<1x32x32xf32> to vector<32x32xf32>
    %cst_26 = arith.constant dense<0.000000e+00> : vector<8x32xf32>
    %71 = tpu.matmul %68, %70, %cst_26 {dimension_numbers = #tpu.dot_dimension_numbers<[1], [0], [0], [1], [0, 0, 1, 1], [], []>} : vector<8x32xf32>, vector<32x32xf32>, vector<8x32xf32> -> vector<8x32xf32>
    %c0_27 = arith.constant 0 : index
    %c0_28 = arith.constant 0 : index
    %c0_29 = arith.constant 0 : index
    %72 = vector.load %arg8[%c0_27, %c0_28, %c0_29] : memref<1x1x32xf32, #tpu.memory_space<vmem>>, vector<1x1x32xf32>
    %73 = vector.shape_cast %72 : vector<1x1x32xf32> to vector<1x32xf32>
    %74 = vector.broadcast %73 : vector<1x32xf32> to vector<8x32xf32>
    %75 = arith.addf %71, %74 : vector<8x32xf32>
    %76 = arith.addf %3, %75 : vector<8x32xf32>
    %c0_30 = arith.constant 0 : index
    %c0_31 = arith.constant 0 : index
    %c0_32 = arith.constant 0 : index
    %77 = vector.load %arg9[%c0_30, %c0_31, %c0_32] : memref<1x1x32xf32, #tpu.memory_space<vmem>>, vector<1x1x32xf32>
    %78 = vector.shape_cast %77 : vector<1x1x32xf32> to vector<1x32xf32>
    %c0_33 = arith.constant 0 : index
    %c0_34 = arith.constant 0 : index
    %c0_35 = arith.constant 0 : index
    %79 = vector.load %arg10[%c0_33, %c0_34, %c0_35] : memref<1x1x32xf32, #tpu.memory_space<vmem>>, vector<1x1x32xf32>
    %80 = vector.shape_cast %79 : vector<1x1x32xf32> to vector<1x32xf32>
    %cst_36 = arith.constant dense<0.000000e+00> : vector<8xf32>
    %81 = vector.multi_reduction <add>, %76, %cst_36 [1] : vector<8x32xf32> to vector<8xf32>
    %82 = vector.shape_cast %81 : vector<8xf32> to vector<8x1xf32>
    %cst_37 = arith.constant 3.200000e+01 : f32
    %83 = vector.broadcast %cst_37 : f32 to vector<8x1xf32>
    %84 = arith.divf %82, %83 : vector<8x1xf32>
    %85 = vector.broadcast %84 : vector<8x1xf32> to vector<8x32xf32>
    %86 = arith.subf %76, %85 : vector<8x32xf32>
    %87 = arith.mulf %86, %86 : vector<8x32xf32>
    %cst_38 = arith.constant dense<0.000000e+00> : vector<8xf32>
    %88 = vector.multi_reduction <add>, %87, %cst_38 [1] : vector<8x32xf32> to vector<8xf32>
    %89 = vector.shape_cast %88 : vector<8xf32> to vector<8x1xf32>
    %cst_39 = arith.constant 3.200000e+01 : f32
    %90 = vector.broadcast %cst_39 : f32 to vector<8x1xf32>
    %91 = arith.divf %89, %90 : vector<8x1xf32>
    %cst_40 = arith.constant 9.99999996E-13 : f32
    %92 = vector.broadcast %cst_40 : f32 to vector<8x1xf32>
    %93 = arith.addf %91, %92 : vector<8x1xf32>
    %94 = math.rsqrt %93 : vector<8x1xf32>
    %95 = vector.broadcast %94 : vector<8x1xf32> to vector<8x32xf32>
    %96 = arith.mulf %86, %95 : vector<8x32xf32>
    %97 = vector.broadcast %78 : vector<1x32xf32> to vector<8x32xf32>
    %98 = arith.mulf %96, %97 : vector<8x32xf32>
    %99 = vector.broadcast %80 : vector<1x32xf32> to vector<8x32xf32>
    %100 = arith.addf %98, %99 : vector<8x32xf32>
    %c0_41 = arith.constant 0 : index
    %c0_42 = arith.constant 0 : index
    %c0_43 = arith.constant 0 : index
    %101 = vector.load %arg11[%c0_41, %c0_42, %c0_43] : memref<1x32x128xf32, #tpu.memory_space<vmem>>, vector<1x32x128xf32>
    %102 = vector.shape_cast %101 : vector<1x32x128xf32> to vector<32x128xf32>
    %cst_44 = arith.constant dense<0.000000e+00> : vector<8x128xf32>
    %103 = tpu.matmul %100, %102, %cst_44 {dimension_numbers = #tpu.dot_dimension_numbers<[1], [0], [0], [1], [0, 0, 1, 1], [], []>} : vector<8x32xf32>, vector<32x128xf32>, vector<8x128xf32> -> vector<8x128xf32>
    %c0_45 = arith.constant 0 : index
    %c0_46 = arith.constant 0 : index
    %c0_47 = arith.constant 0 : index
    %104 = vector.load %arg12[%c0_45, %c0_46, %c0_47] : memref<1x1x128xf32, #tpu.memory_space<vmem>>, vector<1x1x128xf32>
    %105 = vector.shape_cast %104 : vector<1x1x128xf32> to vector<1x128xf32>
    %106 = vector.broadcast %105 : vector<1x128xf32> to vector<8x128xf32>
    %107 = arith.addf %103, %106 : vector<8x128xf32>
    %cst_48 = arith.constant 1.702000e+00 : f32
    %108 = vector.broadcast %cst_48 : f32 to vector<8x128xf32>
    %109 = arith.mulf %108, %107 : vector<8x128xf32>
    %110 = arith.negf %109 : vector<8x128xf32>
    %111 = math.exp %110 : vector<8x128xf32>
    %cst_49 = arith.constant 1.000000e+00 : f32
    %112 = vector.broadcast %cst_49 : f32 to vector<8x128xf32>
    %113 = arith.addf %112, %111 : vector<8x128xf32>
    %114 = arith.divf %112, %113 : vector<8x128xf32>
    %115 = arith.mulf %107, %114 : vector<8x128xf32>
    %c0_50 = arith.constant 0 : index
    %c0_51 = arith.constant 0 : index
    %c0_52 = arith.constant 0 : index
    %116 = vector.load %arg13[%c0_50, %c0_51, %c0_52] : memref<1x128x32xf32, #tpu.memory_space<vmem>>, vector<1x128x32xf32>
    %117 = vector.shape_cast %116 : vector<1x128x32xf32> to vector<128x32xf32>
    %cst_53 = arith.constant dense<0.000000e+00> : vector<8x32xf32>
    %118 = tpu.matmul %115, %117, %cst_53 {dimension_numbers = #tpu.dot_dimension_numbers<[1], [0], [0], [1], [0, 0, 1, 1], [], []>} : vector<8x128xf32>, vector<128x32xf32>, vector<8x32xf32> -> vector<8x32xf32>
    %c0_54 = arith.constant 0 : index
    %c0_55 = arith.constant 0 : index
    %c0_56 = arith.constant 0 : index
    %119 = vector.load %arg14[%c0_54, %c0_55, %c0_56] : memref<1x1x32xf32, #tpu.memory_space<vmem>>, vector<1x1x32xf32>
    %120 = vector.shape_cast %119 : vector<1x1x32xf32> to vector<1x32xf32>
    %121 = vector.broadcast %120 : vector<1x32xf32> to vector<8x32xf32>
    %122 = arith.addf %118, %121 : vector<8x32xf32>
    %123 = arith.addf %76, %122 : vector<8x32xf32>
    %c0_57 = arith.constant 0 : index
    %c0_58 = arith.constant 0 : index
    %124 = vector.load %arg16[%c0_57, %c0_58] : memref<8x32xf32, #tpu.memory_space<vmem>>, vector<8x32xf32>
    tpu.vector_store %arg16[%c0_57, %c0_58], %123 {strides = array<i32>} : memref<8x32xf32, #tpu.memory_space<vmem>>, vector<8x32xf32>,
    %c1_i32 = arith.constant 1 : i32
    %125 = arith.cmpi eq, %arg1, %c1_i32 : i32
    %126 = arith.extui %125 : i1 to i32
    %c0_i32_59 = arith.constant 0 : i32
    %127 = arith.cmpi ne, %126, %c0_i32_59 : i32
    scf.if %127 {
      %128 = vector.shape_cast %123 : vector<8x32xf32> to vector<1x8x32xf32>
      %c0_60 = arith.constant 0 : index
      %c0_61 = arith.constant 0 : index
      %c0_62 = arith.constant 0 : index
      %129 = vector.load %arg15[%c0_60, %c0_61, %c0_62] : memref<1x8x32xf32, #tpu.memory_space<vmem>>, vector<1x8x32xf32>
      tpu.vector_store %arg15[%c0_60, %c0_61, %c0_62], %128 {strides = array<i32>} : memref<1x8x32xf32, #tpu.memory_space<vmem>>, vector<1x8x32xf32>,
    } else {
    }
    return
  }
  func.func @transform_0(%arg0: i32, %arg1: i32) -> (i32, i32, i32) {
    %c0_i32 = arith.constant 0 : i32
    %c0_i32_0 = arith.constant 0 : i32
    %c0_i32_1 = arith.constant 0 : i32
    return %arg0, %c0_i32, %c0_i32_0 : i32, i32, i32
  }
  func.func @transform_1(%arg0: i32, %arg1: i32) -> (i32, i32, i32) {
    %c0_i32 = arith.constant 0 : i32
    %c0_i32_0 = arith.constant 0 : i32
    %c0_i32_1 = arith.constant 0 : i32
    return %arg1, %c0_i32, %c0_i32_0 : i32, i32, i32
  }
  func.func @transform_2(%arg0: i32, %arg1: i32) -> (i32, i32, i32) {
    %c0_i32 = arith.constant 0 : i32
    %c0_i32_0 = arith.constant 0 : i32
    %c0_i32_1 = arith.constant 0 : i32
    return %arg1, %c0_i32, %c0_i32_0 : i32, i32, i32
  }
  func.func @transform_3(%arg0: i32, %arg1: i32) -> (i32, i32, i32) {
    %c0_i32 = arith.constant 0 : i32
    %c0_i32_0 = arith.constant 0 : i32
    %c0_i32_1 = arith.constant 0 : i32
    return %arg1, %c0_i32, %c0_i32_0 : i32, i32, i32
  }
  func.func @transform_4(%arg0: i32, %arg1: i32) -> (i32, i32, i32) {
    %c0_i32 = arith.constant 0 : i32
    %c0_i32_0 = arith.constant 0 : i32
    %c0_i32_1 = arith.constant 0 : i32
    return %arg1, %c0_i32, %c0_i32_0 : i32, i32, i32
  }
  func.func @transform_5(%arg0: i32, %arg1: i32) -> (i32, i32, i32) {
    %c0_i32 = arith.constant 0 : i32
    %c0_i32_0 = arith.constant 0 : i32
    %c0_i32_1 = arith.constant 0 : i32
    return %arg1, %c0_i32, %c0_i32_0 : i32, i32, i32
  }
  func.func @transform_6(%arg0: i32, %arg1: i32) -> (i32, i32, i32) {
    %c0_i32 = arith.constant 0 : i32
    %c0_i32_0 = arith.constant 0 : i32
    %c0_i32_1 = arith.constant 0 : i32
    return %arg1, %c0_i32, %c0_i32_0 : i32, i32, i32
  }
  func.func @transform_7(%arg0: i32, %arg1: i32) -> (i32, i32, i32) {
    %c0_i32 = arith.constant 0 : i32
    %c0_i32_0 = arith.constant 0 : i32
    %c0_i32_1 = arith.constant 0 : i32
    return %arg1, %c0_i32, %c0_i32_0 : i32, i32, i32
  }
  func.func @transform_8(%arg0: i32, %arg1: i32) -> (i32, i32, i32) {
    %c0_i32 = arith.constant 0 : i32
    %c0_i32_0 = arith.constant 0 : i32
    %c0_i32_1 = arith.constant 0 : i32
    return %arg1, %c0_i32, %c0_i32_0 : i32, i32, i32
  }
  func.func @transform_9(%arg0: i32, %arg1: i32) -> (i32, i32, i32) {
    %c0_i32 = arith.constant 0 : i32
    %c0_i32_0 = arith.constant 0 : i32
    %c0_i32_1 = arith.constant 0 : i32
    return %arg1, %c0_i32, %c0_i32_0 : i32, i32, i32
  }
  func.func @transform_10(%arg0: i32, %arg1: i32) -> (i32, i32, i32) {
    %c0_i32 = arith.constant 0 : i32
    %c0_i32_0 = arith.constant 0 : i32
    %c0_i32_1 = arith.constant 0 : i32
    return %arg1, %c0_i32, %c0_i32_0 : i32, i32, i32
  }
  func.func @transform_11(%arg0: i32, %arg1: i32) -> (i32, i32, i32) {
    %c0_i32 = arith.constant 0 : i32
    %c0_i32_0 = arith.constant 0 : i32
    %c0_i32_1 = arith.constant 0 : i32
    return %arg1, %c0_i32, %c0_i32_0 : i32, i32, i32
  }
  func.func @transform_12(%arg0: i32, %arg1: i32) -> (i32, i32, i32) {
    %c0_i32 = arith.constant 0 : i32
    %c0_i32_0 = arith.constant 0 : i32
    %c0_i32_1 = arith.constant 0 : i32
    return %arg1, %c0_i32, %c0_i32_0 : i32, i32, i32
  }
  func.func @transform_13(%arg0: i32, %arg1: i32) -> (i32, i32, i32) {
    %c0_i32 = arith.constant 0 : i32
    %c0_i32_0 = arith.constant 0 : i32
    %c0_i32_1 = arith.constant 0 : i32
    return %arg0, %c0_i32, %c0_i32_0 : i32, i32, i32
  }
}

</mosaic_0001>

<llo_original>
// kernel: tpu_custom_call.1
$region0: #{tpu_custom_call.1}
  #allocation0 [shape = 'u32[]', space=smem, size = 0x4, offset = 0x4, fixed_abs, tag = 'smem constant byte address 0x4 - core index']
  #allocation1 [shape = 'u32[144,128]{1,0:T(1,128)}', space=vmem, size = 0x12000, scoped, tag = 'internal scratch']
  #allocation2 [shape = 'f32[8,32]{1,0:T(8,128)}', space=vmem, size = 0x1000, scoped, tag = 'scratch operand']
  %s0 = inlined_call_operand.vmem [shape: f32[2,8,32], index: 0, kind: input, shape index: {}]
  %s1 = inlined_call_operand.vmem [shape: f32[2,1,32], index: 1, kind: input, shape index: {}]
  %s2 = inlined_call_operand.vmem [shape: f32[2,1,32], index: 2, kind: input, shape index: {}]
  %s3 = inlined_call_operand.vmem [shape: f32[2,32,96], index: 3, kind: input, shape index: {}]
  %s4 = inlined_call_operand.vmem [shape: f32[2,1,96], index: 4, kind: input, shape index: {}]
  %s5 = inlined_call_operand.vmem [shape: f32[2,32,32], index: 5, kind: input, shape index: {}]
  %s6 = inlined_call_operand.vmem [shape: f32[2,1,32], index: 6, kind: input, shape index: {}]
  %s7 = inlined_call_operand.vmem [shape: f32[2,1,32], index: 7, kind: input, shape index: {}]
  %s8 = inlined_call_operand.vmem [shape: f32[2,1,32], index: 8, kind: input, shape index: {}]
  %s9 = inlined_call_operand.vmem [shape: f32[2,32,128], index: 9, kind: input, shape index: {}]
  %s10 = inlined_call_operand.vmem [shape: f32[2,1,128], index: 10, kind: input, shape index: {}]
  %s11 = inlined_call_operand.vmem [shape: f32[2,128,32], index: 11, kind: input, shape index: {}]
  %s12 = inlined_call_operand.vmem [shape: f32[2,1,32], index: 12, kind: input, shape index: {}]
  %s13 = inlined_call_operand.hbm [shape: f32[2,8,32], index: 13, kind: output, shape index: {}]
  %s14 = sld [smem:[#allocation0]]
  $region93: #{tpu_custom_call.1} parent=0
    _
  %s16 = ssub.s32 1, %s14
  %s17 = scalar_select 0, %s16, %s14
  $region1: #{tpu_custom_call.1} parent=0
    #allocation3 [shape = 'u8[8192]{0}', space=vmem, size = 0x2000, scoped, tag = 'output window, operand 0']
    #allocation4 [shape = 's32[2]{0}', space=sflag, size = 0x8, scoped, tag = 'scoped memory for tpu_custom_call.1']
    %18 = vsyncpa [#allocation4], 0
    %s19 = scalar_lea.sflag [#allocation4], 1
    %20 = vsyncpa %s19, 0
    loop: start=0, step=1, limit=6
    $region2: #{tpu_custom_call.1} parent=1 // loop_pre_header
      _
    $region3: #{tpu_custom_call.1} parent=1 // loop_header
      %s22 = sphi 0, %s26
      %p23 = scmp.ge.s32.totalorder %s22, 6
      %s29 = sphi 0, %s41
      %s30 = sphi 0, %s37
      %s31 = sphi 0, %s29
      %s32 = sphi 0, %s30
      %s33 = sphi 0, %s31
      %s34 = sphi 0, %s32
      %s44 = sphi 0, %s46
      %s47 = sphi 0, %s44
      %s48 = sphi 0, %s47
      %s64 = sphi 0, %s48
      %s70 = sphi 0, %s72
      %s73 = sphi 0, %s70
      %s74 = sphi 0, %s73
      %s90 = sphi 0, %s74
      %s96 = sphi 0, %s98
      %s99 = sphi 0, %s96
      %s100 = sphi 0, %s99
      %s116 = sphi 0, %s100
      %s122 = sphi 0, %s124
      %s125 = sphi 0, %s122
      %s126 = sphi 0, %s125
      %s142 = sphi 0, %s126
      %s148 = sphi 0, %s150
      %s151 = sphi 0, %s148
      %s152 = sphi 0, %s151
      %s168 = sphi 0, %s152
      %s174 = sphi 0, %s176
      %s177 = sphi 0, %s174
      %s178 = sphi 0, %s177
      %s194 = sphi 0, %s178
      %s200 = sphi 0, %s202
      %s203 = sphi 0, %s200
      %s204 = sphi 0, %s203
      %s220 = sphi 0, %s204
      %s226 = sphi 0, %s228
      %s229 = sphi 0, %s226
      %s230 = sphi 0, %s229
      %s246 = sphi 0, %s230
      %s252 = sphi 0, %s254
      %s255 = sphi 0, %s252
      %s256 = sphi 0, %s255
      %s272 = sphi 0, %s256
      %s278 = sphi 0, %s280
      %s281 = sphi 0, %s278
      %s282 = sphi 0, %s281
      %s298 = sphi 0, %s282
      %s304 = sphi 0, %s306
      %s307 = sphi 0, %s304
      %s308 = sphi 0, %s307
      %s324 = sphi 0, %s308
      %s330 = sphi 0, %s332
      %s333 = sphi 0, %s330
      %s334 = sphi 0, %s333
      %s350 = sphi 0, %s334
      %s356 = sphi 0, %s358
      %s359 = sphi 0, %s356
      %s360 = sphi 0, %s359
      %s376 = sphi 0, %s360
      %s382 = sphi 0, %s384
      %s385 = sphi 0, %s382
      %s386 = sphi 0, %s385
      %s402 = sphi 0, %s386
    $region4: #{tpu_custom_call.1} parent=1 // loop_header_branch
      %25 = sbr.rel (%p23) target = $region8
    $region5: #{tpu_custom_call.1} parent=1 // loop_body
      %s27 = ssub.s32 %s22, 1
      %s28 = ssub.s32 %s22, 2
      %s35 = sadd.s32 1, %s30
      %p36 = scmp.ge.s32.totalorder %s35, 2
      %s37 = scalar_select %p36, 0, %s35
      %s38 = sadd.s32 1, %s29
      %s39 = scalar_select %p36, %s38, %s29
      %p40 = scmp.ge.s32.totalorder %s39, 2
      %s41 = scalar_select %p40, 0, %s39
      %s42 = ssub.s32 %s29, %s41
      %p43 = scmp.eq.s32.totalorder %s42, 0
      %s45 = sadd.s32 %s44, 1
      %s46 = scalar_select %p43, %s44, %s45
      %p49 = pneg %p43
      %p50 = scmp.eq.s32.totalorder %s22, 3
      %p51 = por %p49, %p50
      %p52 = scmp.ne.s32.totalorder %s44, %s47
      %p53 = scmp.eq.s32.totalorder %s22, 0
      %p54 = por %p52, %p53
      %p55 = scmp.ne.s32.totalorder %s44, %s47
      %p56 = scmp.eq.s32.totalorder %s27, 3
      %p57 = por %p55, %p56
      %p58 = scmp.ne.s32.totalorder %s47, %s48
      %p59 = scmp.eq.s32.totalorder %s27, 0
      %p60 = por %p58, %p59
      %p61 = scmp.ne.s32.totalorder %s47, %s48
      %p62 = scmp.eq.s32.totalorder %s28, 3
      %p63 = por %p61, %p62
      %p65 = scmp.ne.s32.totalorder %s48, %s64
      %p66 = scmp.eq.s32.totalorder %s28, 0
      %p67 = por %p65, %p66
      %s68 = ssub.s32 %s30, %s37
      %p69 = scmp.eq.s32.totalorder %s68, 0
      %s71 = sadd.s32 %s70, 1
      %s72 = scalar_select %p69, %s70, %s71
      %p75 = pneg %p69
      %p76 = scmp.eq.s32.totalorder %s22, 3
      %p77 = por %p75, %p76
      %p78 = scmp.ne.s32.totalorder %s70, %s73
      %p79 = scmp.eq.s32.totalorder %s22, 0
      %p80 = por %p78, %p79
      %p81 = scmp.ne.s32.totalorder %s70, %s73
      %p82 = scmp.eq.s32.totalorder %s27, 3
      %p83 = por %p81, %p82
      %p84 = scmp.ne.s32.totalorder %s73, %s74
      %p85 = scmp.eq.s32.totalorder %s27, 0
      %p86 = por %p84, %p85
      %p87 = scmp.ne.s32.totalorder %s73, %s74
      %p88 = scmp.eq.s32.totalorder %s28, 3
      %p89 = por %p87, %p88
      %p91 = scmp.ne.s32.totalorder %s74, %s90
      %p92 = scmp.eq.s32.totalorder %s28, 0
      %p93 = por %p91, %p92
      %s94 = ssub.s32 %s30, %s37
      %p95 = scmp.eq.s32.totalorder %s94, 0
      %s97 = sadd.s32 %s96, 1
      %s98 = scalar_select %p95, %s96, %s97
      %p101 = pneg %p95
      %p102 = scmp.eq.s32.totalorder %s22, 3
      %p103 = por %p101, %p102
      %p104 = scmp.ne.s32.totalorder %s96, %s99
      %p105 = scmp.eq.s32.totalorder %s22, 0
      %p106 = por %p104, %p105
      %p107 = scmp.ne.s32.totalorder %s96, %s99
      %p108 = scmp.eq.s32.totalorder %s27, 3
      %p109 = por %p107, %p108
      %p110 = scmp.ne.s32.totalorder %s99, %s100
      %p111 = scmp.eq.s32.totalorder %s27, 0
      %p112 = por %p110, %p111
      %p113 = scmp.ne.s32.totalorder %s99, %s100
      %p114 = scmp.eq.s32.totalorder %s28, 3
      %p115 = por %p113, %p114
      %p117 = scmp.ne.s32.totalorder %s100, %s116
      %p118 = scmp.eq.s32.totalorder %s28, 0
      %p119 = por %p117, %p118
      %s120 = ssub.s32 %s30, %s37
      %p121 = scmp.eq.s32.totalorder %s120, 0
      %s123 = sadd.s32 %s122, 1
      %s124 = scalar_select %p121, %s122, %s123
      %p127 = pneg %p121
      %p128 = scmp.eq.s32.totalorder %s22, 3
      %p129 = por %p127, %p128
      %p130 = scmp.ne.s32.totalorder %s122, %s125
      %p131 = scmp.eq.s32.totalorder %s22, 0
      %p132 = por %p130, %p131
      %p133 = scmp.ne.s32.totalorder %s122, %s125
      %p134 = scmp.eq.s32.totalorder %s27, 3
      %p135 = por %p133, %p134
      %p136 = scmp.ne.s32.totalorder %s125, %s126
      %p137 = scmp.eq.s32.totalorder %s27, 0
      %p138 = por %p136, %p137
      %p139 = scmp.ne.s32.totalorder %s125, %s126
      %p140 = scmp.eq.s32.totalorder %s28, 3
      %p141 = por %p139, %p140
      %p143 = scmp.ne.s32.totalorder %s126, %s142
      %p144 = scmp.eq.s32.totalorder %s28, 0
      %p145 = por %p143, %p144
      %s146 = ssub.s32 %s30, %s37
      %p147 = scmp.eq.s32.totalorder %s146, 0
      %s149 = sadd.s32 %s148, 1
      %s150 = scalar_select %p147, %s148, %s149
      %p153 = pneg %p147
      %p154 = scmp.eq.s32.totalorder %s22, 3
      %p155 = por %p153, %p154
      %p156 = scmp.ne.s32.totalorder %s148, %s151
      %p157 = scmp.eq.s32.totalorder %s22, 0
      %p158 = por %p156, %p157
      %p159 = scmp.ne.s32.totalorder %s148, %s151
      %p160 = scmp.eq.s32.totalorder %s27, 3
      %p161 = por %p159, %p160
      %p162 = scmp.ne.s32.totalorder %s151, %s152
      %p163 = scmp.eq.s32.totalorder %s27, 0
      %p164 = por %p162, %p163
      %p165 = scmp.ne.s32.totalorder %s151, %s152
      %p166 = scmp.eq.s32.totalorder %s28, 3
      %p167 = por %p165, %p166
      %p169 = scmp.ne.s32.totalorder %s152, %s168
      %p170 = scmp.eq.s32.totalorder %s28, 0
      %p171 = por %p169, %p170
      %s172 = ssub.s32 %s30, %s37
      %p173 = scmp.eq.s32.totalorder %s172, 0
      %s175 = sadd.s32 %s174, 1
      %s176 = scalar_select %p173, %s174, %s175
      %p179 = pneg %p173
      %p180 = scmp.eq.s32.totalorder %s22, 3
      %p181 = por %p179, %p180
      %p182 = scmp.ne.s32.totalorder %s174, %s177
      %p183 = scmp.eq.s32.totalorder %s22, 0
      %p184 = por %p182, %p183
      %p185 = scmp.ne.s32.totalorder %s174, %s177
      %p186 = scmp.eq.s32.totalorder %s27, 3
      %p187 = por %p185, %p186
      %p188 = scmp.ne.s32.totalorder %s177, %s178
      %p189 = scmp.eq.s32.totalorder %s27, 0
      %p190 = por %p188, %p189
      %p191 = scmp.ne.s32.totalorder %s177, %s178
      %p192 = scmp.eq.s32.totalorder %s28, 3
      %p193 = por %p191, %p192
      %p195 = scmp.ne.s32.totalorder %s178, %s194
      %p196 = scmp.eq.s32.totalorder %s28, 0
      %p197 = por %p195, %p196
      %s198 = ssub.s32 %s30, %s37
      %p199 = scmp.eq.s32.totalorder %s198, 0
      %s201 = sadd.s32 %s200, 1
      %s202 = scalar_select %p199, %s200, %s201
      %p205 = pneg %p199
      %p206 = scmp.eq.s32.totalorder %s22, 3
      %p207 = por %p205, %p206
      %p208 = scmp.ne.s32.totalorder %s200, %s203
      %p209 = scmp.eq.s32.totalorder %s22, 0
      %p210 = por %p208, %p209
      %p211 = scmp.ne.s32.totalorder %s200, %s203
      %p212 = scmp.eq.s32.totalorder %s27, 3
      %p213 = por %p211, %p212
      %p214 = scmp.ne.s32.totalorder %s203, %s204
      %p215 = scmp.eq.s32.totalorder %s27, 0
      %p216 = por %p214, %p215
      %p217 = scmp.ne.s32.totalorder %s203, %s204
      %p218 = scmp.eq.s32.totalorder %s28, 3
      %p219 = por %p217, %p218
      %p221 = scmp.ne.s32.totalorder %s204, %s220
      %p222 = scmp.eq.s32.totalorder %s28, 0
      %p223 = por %p221, %p222
      %s224 = ssub.s32 %s30, %s37
      %p225 = scmp.eq.s32.totalorder %s224, 0
      %s227 = sadd.s32 %s226, 1
      %s228 = scalar_select %p225, %s226, %s227
      %p231 = pneg %p225
      %p232 = scmp.eq.s32.totalorder %s22, 3
      %p233 = por %p231, %p232
      %p234 = scmp.ne.s32.totalorder %s226, %s229
      %p235 = scmp.eq.s32.totalorder %s22, 0
      %p236 = por %p234, %p235
      %p237 = scmp.ne.s32.totalorder %s226, %s229
      %p238 = scmp.eq.s32.totalorder %s27, 3
      %p239 = por %p237, %p238
      %p240 = scmp.ne.s32.totalorder %s229, %s230
      %p241 = scmp.eq.s32.totalorder %s27, 0
      %p242 = por %p240, %p241
      %p243 = scmp.ne.s32.totalorder %s229, %s230
      %p244 = scmp.eq.s32.totalorder %s28, 3
      %p245 = por %p243, %p244
      %p247 = scmp.ne.s32.totalorder %s230, %s246
      %p248 = scmp.eq.s32.totalorder %s28, 0
      %p249 = por %p247, %p248
      %s250 = ssub.s32 %s30, %s37
      %p251 = scmp.eq.s32.totalorder %s250, 0
      %s253 = sadd.s32 %s252, 1
      %s254 = scalar_select %p251, %s252, %s253
      %p257 = pneg %p251
      %p258 = scmp.eq.s32.totalorder %s22, 3
      %p259 = por %p257, %p258
      %p260 = scmp.ne.s32.totalorder %s252, %s255
      %p261 = scmp.eq.s32.totalorder %s22, 0
      %p262 = por %p260, %p261
      %p263 = scmp.ne.s32.totalorder %s252, %s255
      %p264 = scmp.eq.s32.totalorder %s27, 3
      %p265 = por %p263, %p264
      %p266 = scmp.ne.s32.totalorder %s255, %s256
      %p267 = scmp.eq.s32.totalorder %s27, 0
      %p268 = por %p266, %p267
      %p269 = scmp.ne.s32.totalorder %s255, %s256
      %p270 = scmp.eq.s32.totalorder %s28, 3
      %p271 = por %p269, %p270
      %p273 = scmp.ne.s32.totalorder %s256, %s272
      %p274 = scmp.eq.s32.totalorder %s28, 0
      %p275 = por %p273, %p274
      %s276 = ssub.s32 %s30, %s37
      %p277 = scmp.eq.s32.totalorder %s276, 0
      %s279 = sadd.s32 %s278, 1
      %s280 = scalar_select %p277, %s278, %s279
      %p283 = pneg %p277
      %p284 = scmp.eq.s32.totalorder %s22, 3
      %p285 = por %p283, %p284
      %p286 = scmp.ne.s32.totalorder %s278, %s281
      %p287 = scmp.eq.s32.totalorder %s22, 0
      %p288 = por %p286, %p287
      %p289 = scmp.ne.s32.totalorder %s278, %s281
      %p290 = scmp.eq.s32.totalorder %s27, 3
      %p291 = por %p289, %p290
      %p292 = scmp.ne.s32.totalorder %s281, %s282
      %p293 = scmp.eq.s32.totalorder %s27, 0
      %p294 = por %p292, %p293
      %p295 = scmp.ne.s32.totalorder %s281, %s282
      %p296 = scmp.eq.s32.totalorder %s28, 3
      %p297 = por %p295, %p296
      %p299 = scmp.ne.s32.totalorder %s282, %s298
      %p300 = scmp.eq.s32.totalorder %s28, 0
      %p301 = por %p299, %p300
      %s302 = ssub.s32 %s30, %s37
      %p303 = scmp.eq.s32.totalorder %s302, 0
      %s305 = sadd.s32 %s304, 1
      %s306 = scalar_select %p303, %s304, %s305
      %p309 = pneg %p303
      %p310 = scmp.eq.s32.totalorder %s22, 3
      %p311 = por %p309, %p310
      %p312 = scmp.ne.s32.totalorder %s304, %s307
      %p313 = scmp.eq.s32.totalorder %s22, 0
      %p314 = por %p312, %p313
      %p315 = scmp.ne.s32.totalorder %s304, %s307
      %p316 = scmp.eq.s32.totalorder %s27, 3
      %p317 = por %p315, %p316
      %p318 = scmp.ne.s32.totalorder %s307, %s308
      %p319 = scmp.eq.s32.totalorder %s27, 0
      %p320 = por %p318, %p319
      %p321 = scmp.ne.s32.totalorder %s307, %s308
      %p322 = scmp.eq.s32.totalorder %s28, 3
      %p323 = por %p321, %p322
      %p325 = scmp.ne.s32.totalorder %s308, %s324
      %p326 = scmp.eq.s32.totalorder %s28, 0
      %p327 = por %p325, %p326
      %s328 = ssub.s32 %s30, %s37
      %p329 = scmp.eq.s32.totalorder %s328, 0
      %s331 = sadd.s32 %s330, 1
      %s332 = scalar_select %p329, %s330, %s331
      %p335 = pneg %p329
      %p336 = scmp.eq.s32.totalorder %s22, 3
      %p337 = por %p335, %p336
      %p338 = scmp.ne.s32.totalorder %s330, %s333
      %p339 = scmp.eq.s32.totalorder %s22, 0
      %p340 = por %p338, %p339
      %p341 = scmp.ne.s32.totalorder %s330, %s333
      %p342 = scmp.eq.s32.totalorder %s27, 3
      %p343 = por %p341, %p342
      %p344 = scmp.ne.s32.totalorder %s333, %s334
      %p345 = scmp.eq.s32.totalorder %s27, 0
      %p346 = por %p344, %p345
      %p347 = scmp.ne.s32.totalorder %s333, %s334
      %p348 = scmp.eq.s32.totalorder %s28, 3
      %p349 = por %p347, %p348
      %p351 = scmp.ne.s32.totalorder %s334, %s350
      %p352 = scmp.eq.s32.totalorder %s28, 0
      %p353 = por %p351, %p352
      %s354 = ssub.s32 %s30, %s37
      %p355 = scmp.eq.s32.totalorder %s354, 0
      %s357 = sadd.s32 %s356, 1
      %s358 = scalar_select %p355, %s356, %s357
      %p361 = pneg %p355
      %p362 = scmp.eq.s32.totalorder %s22, 3
      %p363 = por %p361, %p362
      %p364 = scmp.ne.s32.totalorder %s356, %s359
      %p365 = scmp.eq.s32.totalorder %s22, 0
      %p366 = por %p364, %p365
      %p367 = scmp.ne.s32.totalorder %s356, %s359
      %p368 = scmp.eq.s32.totalorder %s27, 3
      %p369 = por %p367, %p368
      %p370 = scmp.ne.s32.totalorder %s359, %s360
      %p371 = scmp.eq.s32.totalorder %s27, 0
      %p372 = por %p370, %p371
      %p373 = scmp.ne.s32.totalorder %s359, %s360
      %p374 = scmp.eq.s32.totalorder %s28, 3
      %p375 = por %p373, %p374
      %p377 = scmp.ne.s32.totalorder %s360, %s376
      %p378 = scmp.eq.s32.totalorder %s28, 0
      %p379 = por %p377, %p378
      %s380 = ssub.s32 %s29, %s41
      %p381 = scmp.eq.s32.totalorder %s380, 0
      %s383 = sadd.s32 %s382, 1
      %s384 = scalar_select %p381, %s382, %s383
      %p387 = pneg %p381
      %p388 = scmp.eq.s32.totalorder %s22, 3
      %p389 = por %p387, %p388
      %p390 = scmp.ne.s32.totalorder %s382, %s385
      %p391 = scmp.eq.s32.totalorder %s22, 0
      %p392 = por %p390, %p391
      %p393 = scmp.ne.s32.totalorder %s382, %s385
      %p394 = scmp.eq.s32.totalorder %s27, 3
      %p395 = por %p393, %p394
      %p396 = scmp.ne.s32.totalorder %s385, %s386
      %p397 = scmp.eq.s32.totalorder %s27, 0
      %p398 = por %p396, %p397
      %p399 = scmp.ne.s32.totalorder %s385, %s386
      %p400 = scmp.eq.s32.totalorder %s28, 3
      %p401 = por %p399, %p400
      %p403 = scmp.ne.s32.totalorder %s386, %s402
      %p404 = scmp.eq.s32.totalorder %s28, 0
      %p405 = por %p403, %p404
      %p406 = scmp.le.s32.totalorder 1, %s22
      %p407 = scmp.lt.s32.totalorder %s22, 5
      %p408 = pnand %p406, %p407
      %p409 = pneg %p408
      // Predicated region
      $region9: #{tpu_custom_call.1} parent=5 // pred_check
        _
      $region10: #{tpu_custom_call.1} parent=5 // pred_check_branch
        %411 = sbr.rel (%p408) target = $region12
      $region11: #{tpu_custom_call.1} parent=5 // pred_region
        %s412 = ssub.s32 %s22, 1
      $region12: #{tpu_custom_call.1} parent=5 // pred_fallthru
        _
      %p413 = scmp.lt.s32.totalorder %s22, 4
      // Predicated region
      $region13: #{tpu_custom_call.1} parent=5 // pred_check
        %p414 = pneg %p413
      $region14: #{tpu_custom_call.1} parent=5 // pred_check_branch
        %416 = sbr.rel (%p414) target = $region16
      $region15: #{tpu_custom_call.1} parent=5 // pred_region
        // Predicated region
        $region17: #{tpu_custom_call.1} parent=15 // pred_check
          %p417 = pneg %p54
        $region18: #{tpu_custom_call.1} parent=15 // pred_check_branch
          %419 = sbr.rel (%p417) target = $region20
        $region19: #{tpu_custom_call.1} parent=15 // pred_region
          %p420 = scmp.lt.s32.totalorder %s29, 1
          %s421 = scalar_select %p420, %s29, 1
          %s422 = smul.addr %s421, 8
          %s423 = scalar_lea.vmem %s0, %s422
        $region20: #{tpu_custom_call.1} parent=15 // pred_fallthru
          _
        // Predicated region
        $region21: #{tpu_custom_call.1} parent=15 // pred_check
          %p424 = pneg %p80
        $region22: #{tpu_custom_call.1} parent=15 // pred_check_branch
          %426 = sbr.rel (%p424) target = $region24
        $region23: #{tpu_custom_call.1} parent=15 // pred_region
          %p427 = scmp.lt.s32.totalorder %s30, 1
          %s428 = scalar_select %p427, %s30, 1
          %s429 = scalar_lea.vmem %s1, %s428
        $region24: #{tpu_custom_call.1} parent=15 // pred_fallthru
          _
        // Predicated region
        $region25: #{tpu_custom_call.1} parent=15 // pred_check
          %p430 = pneg %p106
        $region26: #{tpu_custom_call.1} parent=15 // pred_check_branch
          %432 = sbr.rel (%p430) target = $region28
        $region27: #{tpu_custom_call.1} parent=15 // pred_region
          %p433 = scmp.lt.s32.totalorder %s30, 1
          %s434 = scalar_select %p433, %s30, 1
          %s435 = scalar_lea.vmem %s2, %s434
        $region28: #{tpu_custom_call.1} parent=15 // pred_fallthru
          _
        // Predicated region
        $region29: #{tpu_custom_call.1} parent=15 // pred_check
          %p436 = pneg %p132
        $region30: #{tpu_custom_call.1} parent=15 // pred_check_branch
          %438 = sbr.rel (%p436) target = $region32
        $region31: #{tpu_custom_call.1} parent=15 // pred_region
          %p439 = scmp.lt.s32.totalorder %s30, 1
          %s440 = scalar_select %p439, %s30, 1
          %s441 = smul.addr %s440, 4
          %s442 = smul.addr %s441, 8
          %s443 = scalar_lea.vmem %s3, %s442
        $region32: #{tpu_custom_call.1} parent=15 // pred_fallthru
          _
        // Predicated region
        $region33: #{tpu_custom_call.1} parent=15 // pred_check
          %p444 = pneg %p158
        $region34: #{tpu_custom_call.1} parent=15 // pred_check_branch
          %446 = sbr.rel (%p444) target = $region36
        $region35: #{tpu_custom_call.1} parent=15 // pred_region
          %p447 = scmp.lt.s32.totalorder %s30, 1
          %s448 = scalar_select %p447, %s30, 1
          %s449 = scalar_lea.vmem %s4, %s448
        $region36: #{tpu_custom_call.1} parent=15 // pred_fallthru
          _
        // Predicated region
        $region37: #{tpu_custom_call.1} parent=15 // pred_check
          %p450 = pneg %p184
        $region38: #{tpu_custom_call.1} parent=15 // pred_check_branch
          %452 = sbr.rel (%p450) target = $region40
        $region39: #{tpu_custom_call.1} parent=15 // pred_region
          %p453 = scmp.lt.s32.totalorder %s30, 1
          %s454 = scalar_select %p453, %s30, 1
          %s455 = smul.addr %s454, 4
          %s456 = smul.addr %s455, 8
          %s457 = scalar_lea.vmem %s5, %s456
        $region40: #{tpu_custom_call.1} parent=15 // pred_fallthru
          _
        // Predicated region
        $region41: #{tpu_custom_call.1} parent=15 // pred_check
          %p458 = pneg %p210
        $region42: #{tpu_custom_call.1} parent=15 // pred_check_branch
          %460 = sbr.rel (%p458) target = $region44
        $region43: #{tpu_custom_call.1} parent=15 // pred_region
          %p461 = scmp.lt.s32.totalorder %s30, 1
          %s462 = scalar_select %p461, %s30, 1
          %s463 = scalar_lea.vmem %s6, %s462
        $region44: #{tpu_custom_call.1} parent=15 // pred_fallthru
          _
        // Predicated region
        $region45: #{tpu_custom_call.1} parent=15 // pred_check
          %p464 = pneg %p236
        $region46: #{tpu_custom_call.1} parent=15 // pred_check_branch
          %466 = sbr.rel (%p464) target = $region48
        $region47: #{tpu_custom_call.1} parent=15 // pred_region
          %p467 = scmp.lt.s32.totalorder %s30, 1
          %s468 = scalar_select %p467, %s30, 1
          %s469 = scalar_lea.vmem %s7, %s468
        $region48: #{tpu_custom_call.1} parent=15 // pred_fallthru
          _
        // Predicated region
        $region49: #{tpu_custom_call.1} parent=15 // pred_check
          %p470 = pneg %p262
        $region50: #{tpu_custom_call.1} parent=15 // pred_check_branch
          %472 = sbr.rel (%p470) target = $region52
        $region51: #{tpu_custom_call.1} parent=15 // pred_region
          %p473 = scmp.lt.s32.totalorder %s30, 1
          %s474 = scalar_select %p473, %s30, 1
          %s475 = scalar_lea.vmem %s8, %s474
        $region52: #{tpu_custom_call.1} parent=15 // pred_fallthru
          _
        // Predicated region
        $region53: #{tpu_custom_call.1} parent=15 // pred_check
          %p476 = pneg %p288
        $region54: #{tpu_custom_call.1} parent=15 // pred_check_branch
          %478 = sbr.rel (%p476) target = $region56
        $region55: #{tpu_custom_call.1} parent=15 // pred_region
          %p479 = scmp.lt.s32.totalorder %s30, 1
          %s480 = scalar_select %p479, %s30, 1
          %s481 = smul.addr %s480, 4
          %s482 = smul.addr %s481, 8
          %s483 = scalar_lea.vmem %s9, %s482
        $region56: #{tpu_custom_call.1} parent=15 // pred_fallthru
          _
        // Predicated region
        $region57: #{tpu_custom_call.1} parent=15 // pred_check
          %p484 = pneg %p314
        $region58: #{tpu_custom_call.1} parent=15 // pred_check_branch
          %486 = sbr.rel (%p484) target = $region60
        $region59: #{tpu_custom_call.1} parent=15 // pred_region
          %p487 = scmp.lt.s32.totalorder %s30, 1
          %s488 = scalar_select %p487, %s30, 1
          %s489 = scalar_lea.vmem %s10, %s488
        $region60: #{tpu_custom_call.1} parent=15 // pred_fallthru
          _
        // Predicated region
        $region61: #{tpu_custom_call.1} parent=15 // pred_check
          %p490 = pneg %p340
        $region62: #{tpu_custom_call.1} parent=15 // pred_check_branch
          %492 = sbr.rel (%p490) target = $region64
        $region63: #{tpu_custom_call.1} parent=15 // pred_region
          %p493 = scmp.lt.s32.totalorder %s30, 1
          %s494 = scalar_select %p493, %s30, 1
          %s495 = smul.addr %s494, 16
          %s496 = smul.addr %s495, 8
          %s497 = scalar_lea.vmem %s11, %s496
        $region64: #{tpu_custom_call.1} parent=15 // pred_fallthru
          _
        // Predicated region
        $region65: #{tpu_custom_call.1} parent=15 // pred_check
          %p498 = pneg %p366
        $region66: #{tpu_custom_call.1} parent=15 // pred_check_branch
          %500 = sbr.rel (%p498) target = $region68
        $region67: #{tpu_custom_call.1} parent=15 // pred_region
          %p501 = scmp.lt.s32.totalorder %s30, 1
          %s502 = scalar_select %p501, %s30, 1
          %s503 = scalar_lea.vmem %s12, %s502
        $region68: #{tpu_custom_call.1} parent=15 // pred_fallthru
          _
      $region16: #{tpu_custom_call.1} parent=5 // pred_fallthru
        _
      %p504 = scmp.le.s32.totalorder 1, %s22
      %p505 = scmp.lt.s32.totalorder %s22, 5
      %p506 = pnand %p504, %p505
      %p507 = pneg %p506
      // Predicated region
      $region69: #{tpu_custom_call.1} parent=5 // pred_check
        _
      $region70: #{tpu_custom_call.1} parent=5 // pred_check_branch
        %509 = sbr.rel (%p506) target = $region72
      $region71: #{tpu_custom_call.1} parent=5 // pred_region
        %s510 = ssub.s32 %s22, 1
        %p511 = scmp.lt.s32.totalorder %s31, 1
        %s512 = scalar_select %p511, %s31, 1
        %s513 = smul.addr %s512, 8
        %s514 = scalar_lea.vmem %s0, %s513
        %p515 = pneg %p60
        %p516 = pneg %p57
        %p517 = scmp.lt.s32.totalorder %s32, 1
        %s518 = scalar_select %p517, %s32, 1
        %s519 = scalar_lea.vmem %s1, %s518
        %p520 = pneg %p86
        %p521 = pneg %p83
        %p522 = scmp.lt.s32.totalorder %s32, 1
        %s523 = scalar_select %p522, %s32, 1
        %s524 = scalar_lea.vmem %s2, %s523
        %p525 = pneg %p112
        %p526 = pneg %p109
        %p527 = scmp.lt.s32.totalorder %s32, 1
        %s528 = scalar_select %p527, %s32, 1
        %s529 = smul.addr %s528, 4
        %s530 = smul.addr %s529, 8
        %s531 = scalar_lea.vmem %s3, %s530
        %p532 = pneg %p138
        %p533 = pneg %p135
        %p534 = scmp.lt.s32.totalorder %s32, 1
        %s535 = scalar_select %p534, %s32, 1
        %s536 = scalar_lea.vmem %s4, %s535
        %p537 = pneg %p164
        %p538 = pneg %p161
        %p539 = scmp.lt.s32.totalorder %s32, 1
        %s540 = scalar_select %p539, %s32, 1
        %s541 = smul.addr %s540, 4
        %s542 = smul.addr %s541, 8
        %s543 = scalar_lea.vmem %s5, %s542
        %p544 = pneg %p190
        %p545 = pneg %p187
        %p546 = scmp.lt.s32.totalorder %s32, 1
        %s547 = scalar_select %p546, %s32, 1
        %s548 = scalar_lea.vmem %s6, %s547
        %p549 = pneg %p216
        %p550 = pneg %p213
        %p551 = scmp.lt.s32.totalorder %s32, 1
        %s552 = scalar_select %p551, %s32, 1
        %s553 = scalar_lea.vmem %s7, %s552
        %p554 = pneg %p242
        %p555 = pneg %p239
        %p556 = scmp.lt.s32.totalorder %s32, 1
        %s557 = scalar_select %p556, %s32, 1
        %s558 = scalar_lea.vmem %s8, %s557
        %p559 = pneg %p268
        %p560 = pneg %p265
        %p561 = scmp.lt.s32.totalorder %s32, 1
        %s562 = scalar_select %p561, %s32, 1
        %s563 = smul.addr %s562, 4
        %s564 = smul.addr %s563, 8
        %s565 = scalar_lea.vmem %s9, %s564
        %p566 = pneg %p294
        %p567 = pneg %p291
        %p568 = scmp.lt.s32.totalorder %s32, 1
        %s569 = scalar_select %p568, %s32, 1
        %s570 = scalar_lea.vmem %s10, %s569
        %p571 = pneg %p320
        %p572 = pneg %p317
        %p573 = scmp.lt.s32.totalorder %s32, 1
        %s574 = scalar_select %p573, %s32, 1
        %s575 = smul.addr %s574, 16
        %s576 = smul.addr %s575, 8
        %s577 = scalar_lea.vmem %s11, %s576
        %p578 = pneg %p346
        %p579 = pneg %p343
        %p580 = scmp.lt.s32.totalorder %s32, 1
        %s581 = scalar_select %p580, %s32, 1
        %s582 = scalar_lea.vmem %s12, %s581
        %p583 = pneg %p372
        %p584 = pneg %p369
        %p585 = pneg %p398
        %p586 = pneg %p395
        %s587 = sand.u32 %s385, 1
        %s588 = scalar_lea.sflag [#allocation4], %s587
        %s589 = sand.u32 %s385, 1
        %s590 = smul.addr %s589, 8
        %s591 = scalar_lea.vmem [#allocation3], %s590
        %p592 = scmp.lt.s32.totalorder %s31, 1
        %s593 = scalar_select %p592, %s31, 1
        %s594 = smul.addr %s593, 8
        %s595 = scalar_lea.vmem %s0, %s594
        %p596 = scmp.lt.s32.totalorder %s32, 1
        %s597 = scalar_select %p596, %s32, 1
        %s598 = scalar_lea.vmem %s1, %s597
        %p599 = scmp.lt.s32.totalorder %s32, 1
        %s600 = scalar_select %p599, %s32, 1
        %s601 = scalar_lea.vmem %s2, %s600
        %p602 = scmp.lt.s32.totalorder %s32, 1
        %s603 = scalar_select %p602, %s32, 1
        %s604 = smul.addr %s603, 4
        %s605 = smul.addr %s604, 8
        %s606 = scalar_lea.vmem %s3, %s605
        %p607 = scmp.lt.s32.totalorder %s32, 1
        %s608 = scalar_select %p607, %s32, 1
        %s609 = scalar_lea.vmem %s4, %s608
        %p610 = scmp.lt.s32.totalorder %s32, 1
        %s611 = scalar_select %p610, %s32, 1
        %s612 = smul.addr %s611, 4
        %s613 = smul.addr %s612, 8
        %s614 = scalar_lea.vmem %s5, %s613
        %p615 = scmp.lt.s32.totalorder %s32, 1
        %s616 = scalar_select %p615, %s32, 1
        %s617 = scalar_lea.vmem %s6, %s616
        %p618 = scmp.lt.s32.totalorder %s32, 1
        %s619 = scalar_select %p618, %s32, 1
        %s620 = scalar_lea.vmem %s7, %s619
        %p621 = scmp.lt.s32.totalorder %s32, 1
        %s622 = scalar_select %p621, %s32, 1
        %s623 = scalar_lea.vmem %s8, %s622
        %p624 = scmp.lt.s32.totalorder %s32, 1
        %s625 = scalar_select %p624, %s32, 1
        %s626 = smul.addr %s625, 4
        %s627 = smul.addr %s626, 8
        %s628 = scalar_lea.vmem %s9, %s627
        %p629 = scmp.lt.s32.totalorder %s32, 1
        %s630 = scalar_select %p629, %s32, 1
        %s631 = scalar_lea.vmem %s10, %s630
        %p632 = scmp.lt.s32.totalorder %s32, 1
        %s633 = scalar_select %p632, %s32, 1
        %s634 = smul.addr %s633, 16
        %s635 = smul.addr %s634, 8
        %s636 = scalar_lea.vmem %s11, %s635
        %p637 = scmp.lt.s32.totalorder %s32, 1
        %s638 = scalar_select %p637, %s32, 1
        %s639 = scalar_lea.vmem %s12, %s638
        %p640 = scmp.eq.s32.totalorder %s32, 0
        // Predicated region
        $region73: #{tpu_custom_call.1} parent=71 // pred_check
          %p641 = pneg %p640
        $region74: #{tpu_custom_call.1} parent=71 // pred_check_branch
          %643 = sbr.rel (%p641) target = $region76
        $region75: #{tpu_custom_call.1} parent=71 // pred_region
          %v644 = vld [vmem:[%s595] sm:$0xff]
          %vm645 = vcmask 261120
          %646 = vst.msk [vmem:[#allocation2] sm:$0xff] %vm645, %v644
        $region76: #{tpu_custom_call.1} parent=71 // pred_fallthru
          _
        %v647 = vld [vmem:[#allocation2] sm:$0xff]
        %v648 = vld [vmem:[%s598] sm:$0x1]
        %v649 = vld [vmem:[%s601] sm:$0x1]
        %vm650 = vcmask 261120
        %v651 = vsel %vm650, %v647, 0.0
        %652 = vadd.xlane.f32.xlu0 %v651
        %v653 = vpop.xlane.xlu0 %652
        %v654 = vrcp.pop 32.0
        %v655 = vmul.f32 %v653, %v654
        %v656 = vsub.f32 %v647, %v655
        %v657 = vmul.f32 %v656, %v656
        %v658 = vsel %vm650, %v657, 0.0
        %659 = vadd.xlane.f32.xlu0 %v658
        %v660 = vpop.xlane.xlu0 %659
        %v661 = vmul.f32 %v660, %v654
        %v662 = vadd.f32 %v661, 1e-12
        %v663 = vrsqrt.pop %v662
        %v664 = vmul.f32 %v656, %v663
        %v666 = vlaneseq
        %v667 = vshrl.u32 %v666, 7
        %v668 = vsub.s32 0, %v667
        %v669 = vrot.slane %v648, %v668
        %v671 = vmul.f32 %v664, %v669
        %v673 = vlaneseq
        %v674 = vshrl.u32 %v673, 7
        %v675 = vsub.s32 0, %v674
        %v676 = vrot.slane %v649, %v675
        %v678 = vadd.f32 %v671, %v676
        %v679 = vld [vmem:[%s606] sm:$0xff]
        %v680 = vld [vmem:[%s606 + $0x8] sm:$0xff]
        %v681 = vld [vmem:[%s606 + $0x10] sm:$0xff]
        %v682 = vld [vmem:[%s606 + $0x18] sm:$0xff]
        %v683 = vld [vmem:[%s609] sm:$0x1]
        %v685 = vlaneseq
        %v686 = vshrl.u32 %v685, 7
        %v687 = vsub.s32 0, %v686
        %v688 = vrot.slane %v683, %v687
        %v691 = vsel %vm650, %v678, 0
        %693 = vmatprep.subr.mxu0 0.0
        %694 = vmatpush1.msra.mxu0 0.0
        %695 = vmatprep.subr.mxu0 0.0
        %696 = vmatpush1.msra.mxu0 0.0
        %697 = vmatprep.subr.mxu0 0.0
        %698 = vmatpush1.msra.mxu0 0.0
        %699 = vmatprep.subr.mxu0 0.0
        %700 = vmatpush1.msra.mxu0 0.0
        %701 = vmatprep.subr.mxu0 0.0
        %702 = vmatpush1.msra.mxu0 0.0
        %703 = vmatprep.subr.mxu0 0.0
        %704 = vmatpush1.msra.mxu0 0.0
        %705 = vmatprep.subr.mxu0 0.0
        %706 = vmatpush1.msra.mxu0 0.0
        %707 = vmatprep.subr.mxu0 0.0
        %708 = vmatpush1.msra.mxu0 0.0
        %709 = vmatprep.subr.mxu0 0.0
        %710 = vmatpush1.msra.mxu0 0.0
        %711 = vmatprep.subr.mxu0 0.0
        %712 = vmatpush1.msra.mxu0 0.0
        %713 = vmatprep.subr.mxu0 0.0
        %714 = vmatpush1.msra.mxu0 0.0
        %715 = vmatprep.subr.mxu0 0.0
        %716 = vmatpush1.msra.mxu0 0.0
        %717 = vmatprep.subr.mxu0 0.0
        %718 = vmatpush1.msra.mxu0 %v682
        %719 = vmatprep.subr.mxu0 0.0
        %720 = vmatpush1.msra.mxu0 %v681
        %721 = vmatprep.subr.mxu0 0.0
        %722 = vmatpush1.msra.mxu0 %v680
        %723 = vmatprep.subr.mxu0 0.0
        %724 = vmatpush1.msra.mxu0 %v679
        %725 = vmatprep.subr.mxu0 0.0
        %726 = vmatpush2.msra.mxu0 0.0
        %727 = vmatprep.subr.mxu0 0.0
        %728 = vmatpush2.msra.mxu0 0.0
        %729 = vmatprep.subr.mxu0 0.0
        %730 = vmatpush2.msra.mxu0 0.0
        %731 = vmatprep.subr.mxu0 0.0
        %732 = vmatpush2.msra.mxu0 0.0
        %733 = vmatprep.subr.mxu0 0.0
        %734 = vmatpush2.msra.mxu0 0.0
        %735 = vmatprep.subr.mxu0 0.0
        %736 = vmatpush2.msra.mxu0 0.0
        %737 = vmatprep.subr.mxu0 0.0
        %738 = vmatpush2.msra.mxu0 0.0
        %739 = vmatprep.subr.mxu0 0.0
        %740 = vmatpush2.msra.mxu0 0.0
        %741 = vmatprep.subr.mxu0 0.0
        %742 = vmatpush2.msra.mxu0 0.0
        %743 = vmatprep.subr.mxu0 0.0
        %744 = vmatpush2.msra.mxu0 0.0
        %745 = vmatprep.subr.mxu0 0.0
        %746 = vmatpush2.msra.mxu0 0.0
        %747 = vmatprep.subr.mxu0 0.0
        %748 = vmatpush2.msra.mxu0 0.0
        %749 = vmatprep.subr.mxu0 0.0
        %750 = vmatpush2.msra.mxu0 0.0
        %751 = vmatprep.subr.mxu0 0.0
        %752 = vmatpush2.msra.mxu0 0.0
        %753 = vmatprep.subr.mxu0 0.0
        %754 = vmatpush2.msra.mxu0 0.0
        %755 = vmatprep.subr.mxu0 0.0
        %756 = vmatpush2.msra.mxu0 0.0
        %757 = vmatprep.mubr.f32.mxu0 0.0
        %758 = vmatmul.mubr.f32.gmra.mxu0 %v691
        %v759 = vpop.f32.mrf.mxu0
        %v760 = vadd.f32 %v688, %v759
        %v761 = vpop.f32.mrf.mxu0
        %762 = vdwg.mxu0
        %764 = vrot.lane.b32.xlu0 %v760, 120
        %v765 = vpop.permute.xlu0 %764
        %766 = vrot.lane.b32.xlu0 %v760, 112
        %v767 = vpop.permute.xlu0 %766
        %768 = vrot.lane.b32.xlu0 %v760, 104
        %v769 = vpop.permute.xlu0 %768
        %770 = vrot.lane.b32.xlu0 %v760, 96
        %v771 = vpop.permute.xlu0 %770
        %vm772 = vcmask 64512
        %v773 = vsel %vm772, %v760, 0
        %v775 = vsel %vm772, %v771, 0
        %777 = vmatprep.subr.mxu0 0.0
        %778 = vmatpush1.xpose.msra.mxu0 0.0
        %779 = vmatprep.subr.mxu0 0.0
        %780 = vmatpush1.xpose.msra.mxu0 0.0
        %781 = vmatprep.subr.mxu0 0.0
        %782 = vmatpush1.xpose.msra.mxu0 0.0
        %783 = vmatprep.subr.mxu0 0.0
        %784 = vmatpush1.xpose.msra.mxu0 0.0
        %785 = vmatprep.subr.mxu0 0.0
        %786 = vmatpush1.xpose.msra.mxu0 0.0
        %787 = vmatprep.subr.mxu0 0.0
        %788 = vmatpush1.xpose.msra.mxu0 0.0
        %789 = vmatprep.subr.mxu0 0.0
        %790 = vmatpush1.xpose.msra.mxu0 0.0
        %791 = vmatprep.subr.mxu0 0.0
        %792 = vmatpush1.xpose.msra.mxu0 0.0
        %793 = vmatprep.subr.mxu0 0.0
        %794 = vmatpush1.xpose.msra.mxu0 0.0
        %795 = vmatprep.subr.mxu0 0.0
        %796 = vmatpush1.xpose.msra.mxu0 0.0
        %797 = vmatprep.subr.mxu0 0.0
        %798 = vmatpush1.xpose.msra.mxu0 0.0
        %799 = vmatprep.subr.mxu0 0.0
        %800 = vmatpush1.xpose.msra.mxu0 0.0
        %801 = vmatprep.subr.mxu0 0.0
        %802 = vmatpush1.xpose.msra.mxu0 0.0
        %803 = vmatprep.subr.mxu0 0.0
        %804 = vmatpush1.xpose.msra.mxu0 0.0
        %805 = vmatprep.subr.mxu0 0.0
        %806 = vmatpush1.xpose.msra.mxu0 0.0
        %807 = vmatprep.subr.mxu0 0.0
        %808 = vmatpush1.xpose.msra.mxu0 %v775
        %809 = vmatprep.subr.mxu0 0.0
        %810 = vmatpush2.xpose.msra.mxu0 0.0
        %811 = vmatprep.subr.mxu0 0.0
        %812 = vmatpush2.xpose.msra.mxu0 0.0
        %813 = vmatprep.subr.mxu0 0.0
        %814 = vmatpush2.xpose.msra.mxu0 0.0
        %815 = vmatprep.subr.mxu0 0.0
        %816 = vmatpush2.xpose.msra.mxu0 0.0
        %817 = vmatprep.subr.mxu0 0.0
        %818 = vmatpush2.xpose.msra.mxu0 0.0
        %819 = vmatprep.subr.mxu0 0.0
        %820 = vmatpush2.xpose.msra.mxu0 0.0
        %821 = vmatprep.subr.mxu0 0.0
        %822 = vmatpush2.xpose.msra.mxu0 0.0
        %823 = vmatprep.subr.mxu0 0.0
        %824 = vmatpush2.xpose.msra.mxu0 0.0
        %825 = vmatprep.subr.mxu0 0.0
        %826 = vmatpush2.xpose.msra.mxu0 0.0
        %827 = vmatprep.subr.mxu0 0.0
        %828 = vmatpush2.xpose.msra.mxu0 0.0
        %829 = vmatprep.subr.mxu0 0.0
        %830 = vmatpush2.xpose.msra.mxu0 0.0
        %831 = vmatprep.subr.mxu0 0.0
        %832 = vmatpush2.xpose.msra.mxu0 0.0
        %833 = vmatprep.subr.mxu0 0.0
        %834 = vmatpush2.xpose.msra.mxu0 0.0
        %835 = vmatprep.subr.mxu0 0.0
        %836 = vmatpush2.xpose.msra.mxu0 0.0
        %837 = vmatprep.subr.mxu0 0.0
        %838 = vmatpush2.xpose.msra.mxu0 0.0
        %839 = vmatprep.subr.mxu0 0.0
        %840 = vmatpush2.xpose.msra.mxu0 0.0
        %841 = vmatprep.mubr.f32.mxu0 0.0
        %842 = vmatmul.mubr.f32.gmra.mxu0 %v773
        %v843 = vpop.f32.mrf.mxu0
        %v844 = vadd.f32 0.0, %v843
        %v845 = vpop.f32.mrf.mxu0
        %846 = vdwg.mxu0
        %847 = vrot.lane.b32.xlu0 %v765, 96
        %v848 = vpop.permute.xlu0 %847
        %v849 = vsel %vm772, %v765, 0
        %v851 = vsel %vm772, %v848, 0
        %853 = vmatprep.subr.mxu0 0.0
        %854 = vmatpush1.xpose.msra.mxu0 0.0
        %855 = vmatprep.subr.mxu0 0.0
        %856 = vmatpush1.xpose.msra.mxu0 0.0
        %857 = vmatprep.subr.mxu0 0.0
        %858 = vmatpush1.xpose.msra.mxu0 0.0
        %859 = vmatprep.subr.mxu0 0.0
        %860 = vmatpush1.xpose.msra.mxu0 0.0
        %861 = vmatprep.subr.mxu0 0.0
        %862 = vmatpush1.xpose.msra.mxu0 0.0
        %863 = vmatprep.subr.mxu0 0.0
        %864 = vmatpush1.xpose.msra.mxu0 0.0
        %865 = vmatprep.subr.mxu0 0.0
        %866 = vmatpush1.xpose.msra.mxu0 0.0
        %867 = vmatprep.subr.mxu0 0.0
        %868 = vmatpush1.xpose.msra.mxu0 0.0
        %869 = vmatprep.subr.mxu0 0.0
        %870 = vmatpush1.xpose.msra.mxu0 0.0
        %871 = vmatprep.subr.mxu0 0.0
        %872 = vmatpush1.xpose.msra.mxu0 0.0
        %873 = vmatprep.subr.mxu0 0.0
        %874 = vmatpush1.xpose.msra.mxu0 0.0
        %875 = vmatprep.subr.mxu0 0.0
        %876 = vmatpush1.xpose.msra.mxu0 0.0
        %877 = vmatprep.subr.mxu0 0.0
        %878 = vmatpush1.xpose.msra.mxu0 0.0
        %879 = vmatprep.subr.mxu0 0.0
        %880 = vmatpush1.xpose.msra.mxu0 0.0
        %881 = vmatprep.subr.mxu0 0.0
        %882 = vmatpush1.xpose.msra.mxu0 0.0
        %883 = vmatprep.subr.mxu0 0.0
        %884 = vmatpush1.xpose.msra.mxu0 %v851
        %885 = vmatprep.subr.mxu0 0.0
        %886 = vmatpush2.xpose.msra.mxu0 0.0
        %887 = vmatprep.subr.mxu0 0.0
        %888 = vmatpush2.xpose.msra.mxu0 0.0
        %889 = vmatprep.subr.mxu0 0.0
        %890 = vmatpush2.xpose.msra.mxu0 0.0
        %891 = vmatprep.subr.mxu0 0.0
        %892 = vmatpush2.xpose.msra.mxu0 0.0
        %893 = vmatprep.subr.mxu0 0.0
        %894 = vmatpush2.xpose.msra.mxu0 0.0
        %895 = vmatprep.subr.mxu0 0.0
        %896 = vmatpush2.xpose.msra.mxu0 0.0
        %897 = vmatprep.subr.mxu0 0.0
        %898 = vmatpush2.xpose.msra.mxu0 0.0
        %899 = vmatprep.subr.mxu0 0.0
        %900 = vmatpush2.xpose.msra.mxu0 0.0
        %901 = vmatprep.subr.mxu0 0.0
        %902 = vmatpush2.xpose.msra.mxu0 0.0
        %903 = vmatprep.subr.mxu0 0.0
        %904 = vmatpush2.xpose.msra.mxu0 0.0
        %905 = vmatprep.subr.mxu0 0.0
        %906 = vmatpush2.xpose.msra.mxu0 0.0
        %907 = vmatprep.subr.mxu0 0.0
        %908 = vmatpush2.xpose.msra.mxu0 0.0
        %909 = vmatprep.subr.mxu0 0.0
        %910 = vmatpush2.xpose.msra.mxu0 0.0
        %911 = vmatprep.subr.mxu0 0.0
        %912 = vmatpush2.xpose.msra.mxu0 0.0
        %913 = vmatprep.subr.mxu0 0.0
        %914 = vmatpush2.xpose.msra.mxu0 0.0
        %915 = vmatprep.subr.mxu0 0.0
        %916 = vmatpush2.xpose.msra.mxu0 0.0
        %917 = vmatprep.mubr.f32.mxu0 0.0
        %918 = vmatmul.mubr.f32.gmra.mxu0 %v849
        %v919 = vpop.f32.mrf.mxu0
        %v920 = vadd.f32 0.0, %v919
        %v921 = vpop.f32.mrf.mxu0
        %922 = vdwg.mxu0
        %923 = vrot.lane.b32.xlu0 %v767, 96
        %v924 = vpop.permute.xlu0 %923
        %v925 = vsel %vm772, %v767, 0
        %v927 = vsel %vm772, %v924, 0
        %929 = vmatprep.subr.mxu0 0.0
        %930 = vmatpush1.xpose.msra.mxu0 0.0
        %931 = vmatprep.subr.mxu0 0.0
        %932 = vmatpush1.xpose.msra.mxu0 0.0
        %933 = vmatprep.subr.mxu0 0.0
        %934 = vmatpush1.xpose.msra.mxu0 0.0
        %935 = vmatprep.subr.mxu0 0.0
        %936 = vmatpush1.xpose.msra.mxu0 0.0
        %937 = vmatprep.subr.mxu0 0.0
        %938 = vmatpush1.xpose.msra.mxu0 0.0
        %939 = vmatprep.subr.mxu0 0.0
        %940 = vmatpush1.xpose.msra.mxu0 0.0
        %941 = vmatprep.subr.mxu0 0.0
        %942 = vmatpush1.xpose.msra.mxu0 0.0
        %943 = vmatprep.subr.mxu0 0.0
        %944 = vmatpush1.xpose.msra.mxu0 0.0
        %945 = vmatprep.subr.mxu0 0.0
        %946 = vmatpush1.xpose.msra.mxu0 0.0
        %947 = vmatprep.subr.mxu0 0.0
        %948 = vmatpush1.xpose.msra.mxu0 0.0
        %949 = vmatprep.subr.mxu0 0.0
        %950 = vmatpush1.xpose.msra.mxu0 0.0
        %951 = vmatprep.subr.mxu0 0.0
        %952 = vmatpush1.xpose.msra.mxu0 0.0
        %953 = vmatprep.subr.mxu0 0.0
        %954 = vmatpush1.xpose.msra.mxu0 0.0
        %955 = vmatprep.subr.mxu0 0.0
        %956 = vmatpush1.xpose.msra.mxu0 0.0
        %957 = vmatprep.subr.mxu0 0.0
        %958 = vmatpush1.xpose.msra.mxu0 0.0
        %959 = vmatprep.subr.mxu0 0.0
        %960 = vmatpush1.xpose.msra.mxu0 %v927
        %961 = vmatprep.subr.mxu0 0.0
        %962 = vmatpush2.xpose.msra.mxu0 0.0
        %963 = vmatprep.subr.mxu0 0.0
        %964 = vmatpush2.xpose.msra.mxu0 0.0
        %965 = vmatprep.subr.mxu0 0.0
        %966 = vmatpush2.xpose.msra.mxu0 0.0
        %967 = vmatprep.subr.mxu0 0.0
        %968 = vmatpush2.xpose.msra.mxu0 0.0
        %969 = vmatprep.subr.mxu0 0.0
        %970 = vmatpush2.xpose.msra.mxu0 0.0
        %971 = vmatprep.subr.mxu0 0.0
        %972 = vmatpush2.xpose.msra.mxu0 0.0
        %973 = vmatprep.subr.mxu0 0.0
        %974 = vmatpush2.xpose.msra.mxu0 0.0
        %975 = vmatprep.subr.mxu0 0.0
        %976 = vmatpush2.xpose.msra.mxu0 0.0
        %977 = vmatprep.subr.mxu0 0.0
        %978 = vmatpush2.xpose.msra.mxu0 0.0
        %979 = vmatprep.subr.mxu0 0.0
        %980 = vmatpush2.xpose.msra.mxu0 0.0
        %981 = vmatprep.subr.mxu0 0.0
        %982 = vmatpush2.xpose.msra.mxu0 0.0
        %983 = vmatprep.subr.mxu0 0.0
        %984 = vmatpush2.xpose.msra.mxu0 0.0
        %985 = vmatprep.subr.mxu0 0.0
        %986 = vmatpush2.xpose.msra.mxu0 0.0
        %987 = vmatprep.subr.mxu0 0.0
        %988 = vmatpush2.xpose.msra.mxu0 0.0
        %989 = vmatprep.subr.mxu0 0.0
        %990 = vmatpush2.xpose.msra.mxu0 0.0
        %991 = vmatprep.subr.mxu0 0.0
        %992 = vmatpush2.xpose.msra.mxu0 0.0
        %993 = vmatprep.mubr.f32.mxu0 0.0
        %994 = vmatmul.mubr.f32.gmra.mxu0 %v925
        %v995 = vpop.f32.mrf.mxu0
        %v996 = vadd.f32 0.0, %v995
        %v997 = vpop.f32.mrf.mxu0
        %998 = vdwg.mxu0
        %999 = vrot.lane.b32.xlu0 %v769, 96
        %v1000 = vpop.permute.xlu0 %999
        %v1001 = vsel %vm772, %v769, 0
        %v1003 = vsel %vm772, %v1000, 0
        %1005 = vmatprep.subr.mxu0 0.0
        %1006 = vmatpush1.xpose.msra.mxu0 0.0
        %1007 = vmatprep.subr.mxu0 0.0
        %1008 = vmatpush1.xpose.msra.mxu0 0.0
        %1009 = vmatprep.subr.mxu0 0.0
        %1010 = vmatpush1.xpose.msra.mxu0 0.0
        %1011 = vmatprep.subr.mxu0 0.0
        %1012 = vmatpush1.xpose.msra.mxu0 0.0
        %1013 = vmatprep.subr.mxu0 0.0
        %1014 = vmatpush1.xpose.msra.mxu0 0.0
        %1015 = vmatprep.subr.mxu0 0.0
        %1016 = vmatpush1.xpose.msra.mxu0 0.0
        %1017 = vmatprep.subr.mxu0 0.0
        %1018 = vmatpush1.xpose.msra.mxu0 0.0
        %1019 = vmatprep.subr.mxu0 0.0
        %1020 = vmatpush1.xpose.msra.mxu0 0.0
        %1021 = vmatprep.subr.mxu0 0.0
        %1022 = vmatpush1.xpose.msra.mxu0 0.0
        %1023 = vmatprep.subr.mxu0 0.0
        %1024 = vmatpush1.xpose.msra.mxu0 0.0
        %1025 = vmatprep.subr.mxu0 0.0
        %1026 = vmatpush1.xpose.msra.mxu0 0.0
        %1027 = vmatprep.subr.mxu0 0.0
        %1028 = vmatpush1.xpose.msra.mxu0 0.0
        %1029 = vmatprep.subr.mxu0 0.0
        %1030 = vmatpush1.xpose.msra.mxu0 0.0
        %1031 = vmatprep.subr.mxu0 0.0
        %1032 = vmatpush1.xpose.msra.mxu0 0.0
        %1033 = vmatprep.subr.mxu0 0.0
        %1034 = vmatpush1.xpose.msra.mxu0 0.0
        %1035 = vmatprep.subr.mxu0 0.0
        %1036 = vmatpush1.xpose.msra.mxu0 %v1003
        %1037 = vmatprep.subr.mxu0 0.0
        %1038 = vmatpush2.xpose.msra.mxu0 0.0
        %1039 = vmatprep.subr.mxu0 0.0
        %1040 = vmatpush2.xpose.msra.mxu0 0.0
        %1041 = vmatprep.subr.mxu0 0.0
        %1042 = vmatpush2.xpose.msra.mxu0 0.0
        %1043 = vmatprep.subr.mxu0 0.0
        %1044 = vmatpush2.xpose.msra.mxu0 0.0
        %1045 = vmatprep.subr.mxu0 0.0
        %1046 = vmatpush2.xpose.msra.mxu0 0.0
        %1047 = vmatprep.subr.mxu0 0.0
        %1048 = vmatpush2.xpose.msra.mxu0 0.0
        %1049 = vmatprep.subr.mxu0 0.0
        %1050 = vmatpush2.xpose.msra.mxu0 0.0
        %1051 = vmatprep.subr.mxu0 0.0
        %1052 = vmatpush2.xpose.msra.mxu0 0.0
        %1053 = vmatprep.subr.mxu0 0.0
        %1054 = vmatpush2.xpose.msra.mxu0 0.0
        %1055 = vmatprep.subr.mxu0 0.0
        %1056 = vmatpush2.xpose.msra.mxu0 0.0
        %1057 = vmatprep.subr.mxu0 0.0
        %1058 = vmatpush2.xpose.msra.mxu0 0.0
        %1059 = vmatprep.subr.mxu0 0.0
        %1060 = vmatpush2.xpose.msra.mxu0 0.0
        %1061 = vmatprep.subr.mxu0 0.0
        %1062 = vmatpush2.xpose.msra.mxu0 0.0
        %1063 = vmatprep.subr.mxu0 0.0
        %1064 = vmatpush2.xpose.msra.mxu0 0.0
        %1065 = vmatprep.subr.mxu0 0.0
        %1066 = vmatpush2.xpose.msra.mxu0 0.0
        %1067 = vmatprep.subr.mxu0 0.0
        %1068 = vmatpush2.xpose.msra.mxu0 0.0
        %1069 = vmatprep.mubr.f32.mxu0 0.0
        %1070 = vmatmul.mubr.f32.gmra.mxu0 %v1001
        %v1071 = vpop.f32.mrf.mxu0
        %v1072 = vadd.f32 0.0, %v1071
        %v1073 = vpop.f32.mrf.mxu0
        %1074 = vdwg.mxu0
        %v1075 = vsel %vm772, %v844, -inf
        %1076 = vmax.xlane.f32.xlu0 %v1075
        %v1077 = vpop.xlane.xlu0 %1076
        %v1078 = vsel %vm772, %v920, -inf
        %1079 = vmax.xlane.f32.xlu0 %v1078
        %v1080 = vpop.xlane.xlu0 %1079
        %v1081 = vsel %vm772, %v996, -inf
        %1082 = vmax.xlane.f32.xlu0 %v1081
        %v1083 = vpop.xlane.xlu0 %1082
        %v1084 = vsel %vm772, %v1072, -inf
        %1085 = vmax.xlane.f32.xlu0 %v1084
        %v1086 = vpop.xlane.xlu0 %1085
        %v1087 = vsub.f32 %v844, %v1077
        %v1088 = vsub.f32 %v920, %v1080
        %v1089 = vsub.f32 %v996, %v1083
        %v1090 = vsub.f32 %v1072, %v1086
        %v1091 = vmul.f32 %v1087, 1.442695
        %v1092 = vpow.pop %v1091
        %v1093 = vmul.f32 %v1088, 1.442695
        %v1094 = vpow.pop %v1093
        %v1095 = vmul.f32 %v1089, 1.442695
        %v1096 = vpow.pop %v1095
        %v1097 = vmul.f32 %v1090, 1.442695
        %v1098 = vpow.pop %v1097
        %v1099 = vsel %vm772, %v1092, 0.0
        %1100 = vadd.xlane.f32.xlu0 %v1099
        %v1101 = vpop.xlane.xlu0 %1100
        %v1102 = vsel %vm772, %v1094, 0.0
        %1103 = vadd.xlane.f32.xlu0 %v1102
        %v1104 = vpop.xlane.xlu0 %1103
        %v1105 = vsel %vm772, %v1096, 0.0
        %1106 = vadd.xlane.f32.xlu0 %v1105
        %v1107 = vpop.xlane.xlu0 %1106
        %v1108 = vsel %vm772, %v1098, 0.0
        %1109 = vadd.xlane.f32.xlu0 %v1108
        %v1110 = vpop.xlane.xlu0 %1109
        %v1111 = vrcp.pop %v1101
        %v1112 = vrcp.pop %v1104
        %v1113 = vrcp.pop %v1107
        %v1114 = vrcp.pop %v1110
        %v1115 = vmul.f32 %v1092, %v1111
        %v1116 = vmul.f32 %v1094, %v1112
        %v1117 = vmul.f32 %v1096, %v1113
        %v1118 = vmul.f32 %v1098, %v1114
        %1119 = vrot.lane.b32.xlu0 %v760, 64
        %v1120 = vpop.permute.xlu0 %1119
        %v1123 = vsel %vm772, %v1115, 0
        %1125 = vmatprep.subr.mxu0 0.0
        %1126 = vmatpush1.msra.mxu0 0.0
        %1127 = vmatprep.subr.mxu0 0.0
        %1128 = vmatpush1.msra.mxu0 0.0
        %1129 = vmatprep.subr.mxu0 0.0
        %1130 = vmatpush1.msra.mxu0 0.0
        %1131 = vmatprep.subr.mxu0 0.0
        %1132 = vmatpush1.msra.mxu0 0.0
        %1133 = vmatprep.subr.mxu0 0.0
        %1134 = vmatpush1.msra.mxu0 0.0
        %1135 = vmatprep.subr.mxu0 0.0
        %1136 = vmatpush1.msra.mxu0 0.0
        %1137 = vmatprep.subr.mxu0 0.0
        %1138 = vmatpush1.msra.mxu0 0.0
        %1139 = vmatprep.subr.mxu0 0.0
        %1140 = vmatpush1.msra.mxu0 0.0
        %1141 = vmatprep.subr.mxu0 0.0
        %1142 = vmatpush1.msra.mxu0 0.0
        %1143 = vmatprep.subr.mxu0 0.0
        %1144 = vmatpush1.msra.mxu0 0.0
        %1145 = vmatprep.subr.mxu0 0.0
        %1146 = vmatpush1.msra.mxu0 0.0
        %1147 = vmatprep.subr.mxu0 0.0
        %1148 = vmatpush1.msra.mxu0 0.0
        %1149 = vmatprep.subr.mxu0 0.0
        %1150 = vmatpush1.msra.mxu0 0.0
        %1151 = vmatprep.subr.mxu0 0.0
        %1152 = vmatpush1.msra.mxu0 0.0
        %1153 = vmatprep.subr.mxu0 0.0
        %1154 = vmatpush1.msra.mxu0 0.0
        %1155 = vmatprep.subr.mxu0 0.0
        %1156 = vmatpush1.msra.mxu0 %v1120
        %1157 = vmatprep.subr.mxu0 0.0
        %1158 = vmatpush2.msra.mxu0 0.0
        %1159 = vmatprep.subr.mxu0 0.0
        %1160 = vmatpush2.msra.mxu0 0.0
        %1161 = vmatprep.subr.mxu0 0.0
        %1162 = vmatpush2.msra.mxu0 0.0
        %1163 = vmatprep.subr.mxu0 0.0
        %1164 = vmatpush2.msra.mxu0 0.0
        %1165 = vmatprep.subr.mxu0 0.0
        %1166 = vmatpush2.msra.mxu0 0.0
        %1167 = vmatprep.subr.mxu0 0.0
        %1168 = vmatpush2.msra.mxu0 0.0
        %1169 = vmatprep.subr.mxu0 0.0
        %1170 = vmatpush2.msra.mxu0 0.0
        %1171 = vmatprep.subr.mxu0 0.0
        %1172 = vmatpush2.msra.mxu0 0.0
        %1173 = vmatprep.subr.mxu0 0.0
        %1174 = vmatpush2.msra.mxu0 0.0
        %1175 = vmatprep.subr.mxu0 0.0
        %1176 = vmatpush2.msra.mxu0 0.0
        %1177 = vmatprep.subr.mxu0 0.0
        %1178 = vmatpush2.msra.mxu0 0.0
        %1179 = vmatprep.subr.mxu0 0.0
        %1180 = vmatpush2.msra.mxu0 0.0
        %1181 = vmatprep.subr.mxu0 0.0
        %1182 = vmatpush2.msra.mxu0 0.0
        %1183 = vmatprep.subr.mxu0 0.0
        %1184 = vmatpush2.msra.mxu0 0.0
        %1185 = vmatprep.subr.mxu0 0.0
        %1186 = vmatpush2.msra.mxu0 0.0
        %1187 = vmatprep.subr.mxu0 0.0
        %1188 = vmatpush2.msra.mxu0 0.0
        %1189 = vmatprep.mubr.f32.mxu0 0.0
        %1190 = vmatmul.mubr.f32.gmra.mxu0 %v1123
        %v1191 = vpop.f32.mrf.mxu0
        %v1192 = vadd.f32 0.0, %v1191
        %v1193 = vpop.f32.mrf.mxu0
        %1194 = vdwg.mxu0
        %1195 = vrot.lane.b32.xlu0 %v765, 64
        %v1196 = vpop.permute.xlu0 %1195
        %v1199 = vsel %vm772, %v1116, 0
        %1201 = vmatprep.subr.mxu0 0.0
        %1202 = vmatpush1.msra.mxu0 0.0
        %1203 = vmatprep.subr.mxu0 0.0
        %1204 = vmatpush1.msra.mxu0 0.0
        %1205 = vmatprep.subr.mxu0 0.0
        %1206 = vmatpush1.msra.mxu0 0.0
        %1207 = vmatprep.subr.mxu0 0.0
        %1208 = vmatpush1.msra.mxu0 0.0
        %1209 = vmatprep.subr.mxu0 0.0
        %1210 = vmatpush1.msra.mxu0 0.0
        %1211 = vmatprep.subr.mxu0 0.0
        %1212 = vmatpush1.msra.mxu0 0.0
        %1213 = vmatprep.subr.mxu0 0.0
        %1214 = vmatpush1.msra.mxu0 0.0
        %1215 = vmatprep.subr.mxu0 0.0
        %1216 = vmatpush1.msra.mxu0 0.0
        %1217 = vmatprep.subr.mxu0 0.0
        %1218 = vmatpush1.msra.mxu0 0.0
        %1219 = vmatprep.subr.mxu0 0.0
        %1220 = vmatpush1.msra.mxu0 0.0
        %1221 = vmatprep.subr.mxu0 0.0
        %1222 = vmatpush1.msra.mxu0 0.0
        %1223 = vmatprep.subr.mxu0 0.0
        %1224 = vmatpush1.msra.mxu0 0.0
        %1225 = vmatprep.subr.mxu0 0.0
        %1226 = vmatpush1.msra.mxu0 0.0
        %1227 = vmatprep.subr.mxu0 0.0
        %1228 = vmatpush1.msra.mxu0 0.0
        %1229 = vmatprep.subr.mxu0 0.0
        %1230 = vmatpush1.msra.mxu0 0.0
        %1231 = vmatprep.subr.mxu0 0.0
        %1232 = vmatpush1.msra.mxu0 %v1196
        %1233 = vmatprep.subr.mxu0 0.0
        %1234 = vmatpush2.msra.mxu0 0.0
        %1235 = vmatprep.subr.mxu0 0.0
        %1236 = vmatpush2.msra.mxu0 0.0
        %1237 = vmatprep.subr.mxu0 0.0
        %1238 = vmatpush2.msra.mxu0 0.0
        %1239 = vmatprep.subr.mxu0 0.0
        %1240 = vmatpush2.msra.mxu0 0.0
        %1241 = vmatprep.subr.mxu0 0.0
        %1242 = vmatpush2.msra.mxu0 0.0
        %1243 = vmatprep.subr.mxu0 0.0
        %1244 = vmatpush2.msra.mxu0 0.0
        %1245 = vmatprep.subr.mxu0 0.0
        %1246 = vmatpush2.msra.mxu0 0.0
        %1247 = vmatprep.subr.mxu0 0.0
        %1248 = vmatpush2.msra.mxu0 0.0
        %1249 = vmatprep.subr.mxu0 0.0
        %1250 = vmatpush2.msra.mxu0 0.0
        %1251 = vmatprep.subr.mxu0 0.0
        %1252 = vmatpush2.msra.mxu0 0.0
        %1253 = vmatprep.subr.mxu0 0.0
        %1254 = vmatpush2.msra.mxu0 0.0
        %1255 = vmatprep.subr.mxu0 0.0
        %1256 = vmatpush2.msra.mxu0 0.0
        %1257 = vmatprep.subr.mxu0 0.0
        %1258 = vmatpush2.msra.mxu0 0.0
        %1259 = vmatprep.subr.mxu0 0.0
        %1260 = vmatpush2.msra.mxu0 0.0
        %1261 = vmatprep.subr.mxu0 0.0
        %1262 = vmatpush2.msra.mxu0 0.0
        %1263 = vmatprep.subr.mxu0 0.0
        %1264 = vmatpush2.msra.mxu0 0.0
        %1265 = vmatprep.mubr.f32.mxu0 0.0
        %1266 = vmatmul.mubr.f32.gmra.mxu0 %v1199
        %v1267 = vpop.f32.mrf.mxu0
        %v1268 = vadd.f32 0.0, %v1267
        %v1269 = vpop.f32.mrf.mxu0
        %1270 = vdwg.mxu0
        %1271 = vrot.lane.b32.xlu0 %v767, 64
        %v1272 = vpop.permute.xlu0 %1271
        %v1275 = vsel %vm772, %v1117, 0
        %1277 = vmatprep.subr.mxu0 0.0
        %1278 = vmatpush1.msra.mxu0 0.0
        %1279 = vmatprep.subr.mxu0 0.0
        %1280 = vmatpush1.msra.mxu0 0.0
        %1281 = vmatprep.subr.mxu0 0.0
        %1282 = vmatpush1.msra.mxu0 0.0
        %1283 = vmatprep.subr.mxu0 0.0
        %1284 = vmatpush1.msra.mxu0 0.0
        %1285 = vmatprep.subr.mxu0 0.0
        %1286 = vmatpush1.msra.mxu0 0.0
        %1287 = vmatprep.subr.mxu0 0.0
        %1288 = vmatpush1.msra.mxu0 0.0
        %1289 = vmatprep.subr.mxu0 0.0
        %1290 = vmatpush1.msra.mxu0 0.0
        %1291 = vmatprep.subr.mxu0 0.0
        %1292 = vmatpush1.msra.mxu0 0.0
        %1293 = vmatprep.subr.mxu0 0.0
        %1294 = vmatpush1.msra.mxu0 0.0
        %1295 = vmatprep.subr.mxu0 0.0
        %1296 = vmatpush1.msra.mxu0 0.0
        %1297 = vmatprep.subr.mxu0 0.0
        %1298 = vmatpush1.msra.mxu0 0.0
        %1299 = vmatprep.subr.mxu0 0.0
        %1300 = vmatpush1.msra.mxu0 0.0
        %1301 = vmatprep.subr.mxu0 0.0
        %1302 = vmatpush1.msra.mxu0 0.0
        %1303 = vmatprep.subr.mxu0 0.0
        %1304 = vmatpush1.msra.mxu0 0.0
        %1305 = vmatprep.subr.mxu0 0.0
        %1306 = vmatpush1.msra.mxu0 0.0
        %1307 = vmatprep.subr.mxu0 0.0
        %1308 = vmatpush1.msra.mxu0 %v1272
        %1309 = vmatprep.subr.mxu0 0.0
        %1310 = vmatpush2.msra.mxu0 0.0
        %1311 = vmatprep.subr.mxu0 0.0
        %1312 = vmatpush2.msra.mxu0 0.0
        %1313 = vmatprep.subr.mxu0 0.0
        %1314 = vmatpush2.msra.mxu0 0.0
        %1315 = vmatprep.subr.mxu0 0.0
        %1316 = vmatpush2.msra.mxu0 0.0
        %1317 = vmatprep.subr.mxu0 0.0
        %1318 = vmatpush2.msra.mxu0 0.0
        %1319 = vmatprep.subr.mxu0 0.0
        %1320 = vmatpush2.msra.mxu0 0.0
        %1321 = vmatprep.subr.mxu0 0.0
        %1322 = vmatpush2.msra.mxu0 0.0
        %1323 = vmatprep.subr.mxu0 0.0
        %1324 = vmatpush2.msra.mxu0 0.0
        %1325 = vmatprep.subr.mxu0 0.0
        %1326 = vmatpush2.msra.mxu0 0.0
        %1327 = vmatprep.subr.mxu0 0.0
        %1328 = vmatpush2.msra.mxu0 0.0
        %1329 = vmatprep.subr.mxu0 0.0
        %1330 = vmatpush2.msra.mxu0 0.0
        %1331 = vmatprep.subr.mxu0 0.0
        %1332 = vmatpush2.msra.mxu0 0.0
        %1333 = vmatprep.subr.mxu0 0.0
        %1334 = vmatpush2.msra.mxu0 0.0
        %1335 = vmatprep.subr.mxu0 0.0
        %1336 = vmatpush2.msra.mxu0 0.0
        %1337 = vmatprep.subr.mxu0 0.0
        %1338 = vmatpush2.msra.mxu0 0.0
        %1339 = vmatprep.subr.mxu0 0.0
        %1340 = vmatpush2.msra.mxu0 0.0
        %1341 = vmatprep.mubr.f32.mxu0 0.0
        %1342 = vmatmul.mubr.f32.gmra.mxu0 %v1275
        %v1343 = vpop.f32.mrf.mxu0
        %v1344 = vadd.f32 0.0, %v1343
        %v1345 = vpop.f32.mrf.mxu0
        %1346 = vdwg.mxu0
        %1347 = vrot.lane.b32.xlu0 %v769, 64
        %v1348 = vpop.permute.xlu0 %1347
        %v1351 = vsel %vm772, %v1118, 0
        %1353 = vmatprep.subr.mxu0 0.0
        %1354 = vmatpush1.msra.mxu0 0.0
        %1355 = vmatprep.subr.mxu0 0.0
        %1356 = vmatpush1.msra.mxu0 0.0
        %1357 = vmatprep.subr.mxu0 0.0
        %1358 = vmatpush1.msra.mxu0 0.0
        %1359 = vmatprep.subr.mxu0 0.0
        %1360 = vmatpush1.msra.mxu0 0.0
        %1361 = vmatprep.subr.mxu0 0.0
        %1362 = vmatpush1.msra.mxu0 0.0
        %1363 = vmatprep.subr.mxu0 0.0
        %1364 = vmatpush1.msra.mxu0 0.0
        %1365 = vmatprep.subr.mxu0 0.0
        %1366 = vmatpush1.msra.mxu0 0.0
        %1367 = vmatprep.subr.mxu0 0.0
        %1368 = vmatpush1.msra.mxu0 0.0
        %1369 = vmatprep.subr.mxu0 0.0
        %1370 = vmatpush1.msra.mxu0 0.0
        %1371 = vmatprep.subr.mxu0 0.0
        %1372 = vmatpush1.msra.mxu0 0.0
        %1373 = vmatprep.subr.mxu0 0.0
        %1374 = vmatpush1.msra.mxu0 0.0
        %1375 = vmatprep.subr.mxu0 0.0
        %1376 = vmatpush1.msra.mxu0 0.0
        %1377 = vmatprep.subr.mxu0 0.0
        %1378 = vmatpush1.msra.mxu0 0.0
        %1379 = vmatprep.subr.mxu0 0.0
        %1380 = vmatpush1.msra.mxu0 0.0
        %1381 = vmatprep.subr.mxu0 0.0
        %1382 = vmatpush1.msra.mxu0 0.0
        %1383 = vmatprep.subr.mxu0 0.0
        %1384 = vmatpush1.msra.mxu0 %v1348
        %1385 = vmatprep.subr.mxu0 0.0
        %1386 = vmatpush2.msra.mxu0 0.0
        %1387 = vmatprep.subr.mxu0 0.0
        %1388 = vmatpush2.msra.mxu0 0.0
        %1389 = vmatprep.subr.mxu0 0.0
        %1390 = vmatpush2.msra.mxu0 0.0
        %1391 = vmatprep.subr.mxu0 0.0
        %1392 = vmatpush2.msra.mxu0 0.0
        %1393 = vmatprep.subr.mxu0 0.0
        %1394 = vmatpush2.msra.mxu0 0.0
        %1395 = vmatprep.subr.mxu0 0.0
        %1396 = vmatpush2.msra.mxu0 0.0
        %1397 = vmatprep.subr.mxu0 0.0
        %1398 = vmatpush2.msra.mxu0 0.0
        %1399 = vmatprep.subr.mxu0 0.0
        %1400 = vmatpush2.msra.mxu0 0.0
        %1401 = vmatprep.subr.mxu0 0.0
        %1402 = vmatpush2.msra.mxu0 0.0
        %1403 = vmatprep.subr.mxu0 0.0
        %1404 = vmatpush2.msra.mxu0 0.0
        %1405 = vmatprep.subr.mxu0 0.0
        %1406 = vmatpush2.msra.mxu0 0.0
        %1407 = vmatprep.subr.mxu0 0.0
        %1408 = vmatpush2.msra.mxu0 0.0
        %1409 = vmatprep.subr.mxu0 0.0
        %1410 = vmatpush2.msra.mxu0 0.0
        %1411 = vmatprep.subr.mxu0 0.0
        %1412 = vmatpush2.msra.mxu0 0.0
        %1413 = vmatprep.subr.mxu0 0.0
        %1414 = vmatpush2.msra.mxu0 0.0
        %1415 = vmatprep.subr.mxu0 0.0
        %1416 = vmatpush2.msra.mxu0 0.0
        %1417 = vmatprep.mubr.f32.mxu0 0.0
        %1418 = vmatmul.mubr.f32.gmra.mxu0 %v1351
        %v1419 = vpop.f32.mrf.mxu0
        %v1420 = vadd.f32 0.0, %v1419
        %v1421 = vpop.f32.mrf.mxu0
        %1422 = vdwg.mxu0
        %1424 = vrot.lane.b32.xlu0 %v1268, 8
        %v1425 = vpop.permute.xlu0 %1424
        %1428 = vrot.lane.b32.xlu0 %v1344, 16
        %v1429 = vpop.permute.xlu0 %1428
        %1432 = vrot.lane.b32.xlu0 %v1420, 24
        %v1433 = vpop.permute.xlu0 %1432
        %v1435 = vsel %vm772, %v1192, %v1425
        %vm1436 = vcmask 130048
        %v1437 = vsel %vm1436, %v1435, %v1429
        %vm1438 = vcmask 195584
        %v1439 = vsel %vm1438, %v1437, %v1433
        %v1440 = vld [vmem:[%s614] sm:$0xff]
        %v1441 = vld [vmem:[%s614 + $0x8] sm:$0xff]
        %v1442 = vld [vmem:[%s614 + $0x10] sm:$0xff]
        %v1443 = vld [vmem:[%s614 + $0x18] sm:$0xff]
        %v1444 = vld [vmem:[%s617] sm:$0x1]
        %v1446 = vlaneseq
        %v1447 = vshrl.u32 %v1446, 7
        %v1448 = vsub.s32 0, %v1447
        %v1449 = vrot.slane %v1444, %v1448
        %v1452 = vsel %vm650, %v1439, 0
        %1454 = vmatprep.subr.mxu0 0.0
        %1455 = vmatpush1.msra.mxu0 0.0
        %1456 = vmatprep.subr.mxu0 0.0
        %1457 = vmatpush1.msra.mxu0 0.0
        %1458 = vmatprep.subr.mxu0 0.0
        %1459 = vmatpush1.msra.mxu0 0.0
        %1460 = vmatprep.subr.mxu0 0.0
        %1461 = vmatpush1.msra.mxu0 0.0
        %1462 = vmatprep.subr.mxu0 0.0
        %1463 = vmatpush1.msra.mxu0 0.0
        %1464 = vmatprep.subr.mxu0 0.0
        %1465 = vmatpush1.msra.mxu0 0.0
        %1466 = vmatprep.subr.mxu0 0.0
        %1467 = vmatpush1.msra.mxu0 0.0
        %1468 = vmatprep.subr.mxu0 0.0
        %1469 = vmatpush1.msra.mxu0 0.0
        %1470 = vmatprep.subr.mxu0 0.0
        %1471 = vmatpush1.msra.mxu0 0.0
        %1472 = vmatprep.subr.mxu0 0.0
        %1473 = vmatpush1.msra.mxu0 0.0
        %1474 = vmatprep.subr.mxu0 0.0
        %1475 = vmatpush1.msra.mxu0 0.0
        %1476 = vmatprep.subr.mxu0 0.0
        %1477 = vmatpush1.msra.mxu0 0.0
        %1478 = vmatprep.subr.mxu0 0.0
        %1479 = vmatpush1.msra.mxu0 %v1443
        %1480 = vmatprep.subr.mxu0 0.0
        %1481 = vmatpush1.msra.mxu0 %v1442
        %1482 = vmatprep.subr.mxu0 0.0
        %1483 = vmatpush1.msra.mxu0 %v1441
        %1484 = vmatprep.subr.mxu0 0.0
        %1485 = vmatpush1.msra.mxu0 %v1440
        %1486 = vmatprep.subr.mxu0 0.0
        %1487 = vmatpush2.msra.mxu0 0.0
        %1488 = vmatprep.subr.mxu0 0.0
        %1489 = vmatpush2.msra.mxu0 0.0
        %1490 = vmatprep.subr.mxu0 0.0
        %1491 = vmatpush2.msra.mxu0 0.0
        %1492 = vmatprep.subr.mxu0 0.0
        %1493 = vmatpush2.msra.mxu0 0.0
        %1494 = vmatprep.subr.mxu0 0.0
        %1495 = vmatpush2.msra.mxu0 0.0
        %1496 = vmatprep.subr.mxu0 0.0
        %1497 = vmatpush2.msra.mxu0 0.0
        %1498 = vmatprep.subr.mxu0 0.0
        %1499 = vmatpush2.msra.mxu0 0.0
        %1500 = vmatprep.subr.mxu0 0.0
        %1501 = vmatpush2.msra.mxu0 0.0
        %1502 = vmatprep.subr.mxu0 0.0
        %1503 = vmatpush2.msra.mxu0 0.0
        %1504 = vmatprep.subr.mxu0 0.0
        %1505 = vmatpush2.msra.mxu0 0.0
        %1506 = vmatprep.subr.mxu0 0.0
        %1507 = vmatpush2.msra.mxu0 0.0
        %1508 = vmatprep.subr.mxu0 0.0
        %1509 = vmatpush2.msra.mxu0 0.0
        %1510 = vmatprep.subr.mxu0 0.0
        %1511 = vmatpush2.msra.mxu0 0.0
        %1512 = vmatprep.subr.mxu0 0.0
        %1513 = vmatpush2.msra.mxu0 0.0
        %1514 = vmatprep.subr.mxu0 0.0
        %1515 = vmatpush2.msra.mxu0 0.0
        %1516 = vmatprep.subr.mxu0 0.0
        %1517 = vmatpush2.msra.mxu0 0.0
        %1518 = vmatprep.mubr.f32.mxu0 0.0
        %1519 = vmatmul.mubr.f32.gmra.mxu0 %v1452
        %v1520 = vpop.f32.mrf.mxu0
        %v1521 = vadd.f32 %v1449, %v1520
        %v1522 = vpop.f32.mrf.mxu0
        %1523 = vdwg.mxu0
        %v1524 = vadd.f32 %v647, %v1521
        %v1525 = vld [vmem:[%s620] sm:$0x1]
        %v1526 = vld [vmem:[%s623] sm:$0x1]
        %v1527 = vsel %vm650, %v1524, 0.0
        %1528 = vadd.xlane.f32.xlu0 %v1527
        %v1529 = vpop.xlane.xlu0 %1528
        %v1530 = vmul.f32 %v1529, %v654
        %v1531 = vsub.f32 %v1524, %v1530
        %v1532 = vmul.f32 %v1531, %v1531
        %v1533 = vsel %vm650, %v1532, 0.0
        %1534 = vadd.xlane.f32.xlu0 %v1533
        %v1535 = vpop.xlane.xlu0 %1534
        %v1536 = vmul.f32 %v1535, %v654
        %v1537 = vadd.f32 %v1536, 1e-12
        %v1538 = vrsqrt.pop %v1537
        %v1539 = vmul.f32 %v1531, %v1538
        %v1541 = vlaneseq
        %v1542 = vshrl.u32 %v1541, 7
        %v1543 = vsub.s32 0, %v1542
        %v1544 = vrot.slane %v1525, %v1543
        %v1546 = vmul.f32 %v1539, %v1544
        %v1548 = vlaneseq
        %v1549 = vshrl.u32 %v1548, 7
        %v1550 = vsub.s32 0, %v1549
        %v1551 = vrot.slane %v1526, %v1550
        %v1553 = vadd.f32 %v1546, %v1551
        %v1554 = vld [vmem:[%s628] sm:$0xff]
        %v1555 = vld [vmem:[%s628 + $0x8] sm:$0xff]
        %v1556 = vld [vmem:[%s628 + $0x10] sm:$0xff]
        %v1557 = vld [vmem:[%s628 + $0x18] sm:$0xff]
        %v1558 = vld [vmem:[%s631] sm:$0x1]
        %v1560 = vlaneseq
        %v1561 = vshrl.u32 %v1560, 7
        %v1562 = vsub.s32 0, %v1561
        %v1563 = vrot.slane %v1558, %v1562
        %v1566 = vsel %vm650, %v1553, 0
        %1568 = vmatprep.subr.mxu0 0.0
        %1569 = vmatpush1.msra.mxu0 0.0
        %1570 = vmatprep.subr.mxu0 0.0
        %1571 = vmatpush1.msra.mxu0 0.0
        %1572 = vmatprep.subr.mxu0 0.0
        %1573 = vmatpush1.msra.mxu0 0.0
        %1574 = vmatprep.subr.mxu0 0.0
        %1575 = vmatpush1.msra.mxu0 0.0
        %1576 = vmatprep.subr.mxu0 0.0
        %1577 = vmatpush1.msra.mxu0 0.0
        %1578 = vmatprep.subr.mxu0 0.0
        %1579 = vmatpush1.msra.mxu0 0.0
        %1580 = vmatprep.subr.mxu0 0.0
        %1581 = vmatpush1.msra.mxu0 0.0
        %1582 = vmatprep.subr.mxu0 0.0
        %1583 = vmatpush1.msra.mxu0 0.0
        %1584 = vmatprep.subr.mxu0 0.0
        %1585 = vmatpush1.msra.mxu0 0.0
        %1586 = vmatprep.subr.mxu0 0.0
        %1587 = vmatpush1.msra.mxu0 0.0
        %1588 = vmatprep.subr.mxu0 0.0
        %1589 = vmatpush1.msra.mxu0 0.0
        %1590 = vmatprep.subr.mxu0 0.0
        %1591 = vmatpush1.msra.mxu0 0.0
        %1592 = vmatprep.subr.mxu0 0.0
        %1593 = vmatpush1.msra.mxu0 %v1557
        %1594 = vmatprep.subr.mxu0 0.0
        %1595 = vmatpush1.msra.mxu0 %v1556
        %1596 = vmatprep.subr.mxu0 0.0
        %1597 = vmatpush1.msra.mxu0 %v1555
        %1598 = vmatprep.subr.mxu0 0.0
        %1599 = vmatpush1.msra.mxu0 %v1554
        %1600 = vmatprep.subr.mxu0 0.0
        %1601 = vmatpush2.msra.mxu0 0.0
        %1602 = vmatprep.subr.mxu0 0.0
        %1603 = vmatpush2.msra.mxu0 0.0
        %1604 = vmatprep.subr.mxu0 0.0
        %1605 = vmatpush2.msra.mxu0 0.0
        %1606 = vmatprep.subr.mxu0 0.0
        %1607 = vmatpush2.msra.mxu0 0.0
        %1608 = vmatprep.subr.mxu0 0.0
        %1609 = vmatpush2.msra.mxu0 0.0
        %1610 = vmatprep.subr.mxu0 0.0
        %1611 = vmatpush2.msra.mxu0 0.0
        %1612 = vmatprep.subr.mxu0 0.0
        %1613 = vmatpush2.msra.mxu0 0.0
        %1614 = vmatprep.subr.mxu0 0.0
        %1615 = vmatpush2.msra.mxu0 0.0
        %1616 = vmatprep.subr.mxu0 0.0
        %1617 = vmatpush2.msra.mxu0 0.0
        %1618 = vmatprep.subr.mxu0 0.0
        %1619 = vmatpush2.msra.mxu0 0.0
        %1620 = vmatprep.subr.mxu0 0.0
        %1621 = vmatpush2.msra.mxu0 0.0
        %1622 = vmatprep.subr.mxu0 0.0
        %1623 = vmatpush2.msra.mxu0 0.0
        %1624 = vmatprep.subr.mxu0 0.0
        %1625 = vmatpush2.msra.mxu0 0.0
        %1626 = vmatprep.subr.mxu0 0.0
        %1627 = vmatpush2.msra.mxu0 0.0
        %1628 = vmatprep.subr.mxu0 0.0
        %1629 = vmatpush2.msra.mxu0 0.0
        %1630 = vmatprep.subr.mxu0 0.0
        %1631 = vmatpush2.msra.mxu0 0.0
        %1632 = vmatprep.mubr.f32.mxu0 0.0
        %1633 = vmatmul.mubr.f32.gmra.mxu0 %v1566
        %v1634 = vpop.f32.mrf.mxu0
        %v1635 = vadd.f32 %v1563, %v1634
        %v1636 = vpop.f32.mrf.mxu0
        %1637 = vdwg.mxu0
        %v1638 = vmul.f32 %v1635, 1.702
        %v1639 = vxor.u32 %v1638, 2147483648
        %v1640 = vmul.f32 %v1639, 1.442695
        %v1641 = vpow.pop %v1640
        %v1642 = vadd.f32 %v1641, 1.0
        %v1643 = vrcp.pop %v1642
        %v1644 = vmul.f32 1.0, %v1643
        %v1645 = vmul.f32 %v1635, %v1644
        %v1646 = vld [vmem:[%s636] sm:$0xff]
        %v1647 = vld [vmem:[%s636 + $0x8] sm:$0xff]
        %v1648 = vld [vmem:[%s636 + $0x10] sm:$0xff]
        %v1649 = vld [vmem:[%s636 + $0x18] sm:$0xff]
        %v1650 = vld [vmem:[%s636 + $0x20] sm:$0xff]
        %v1651 = vld [vmem:[%s636 + $0x28] sm:$0xff]
        %v1652 = vld [vmem:[%s636 + $0x30] sm:$0xff]
        %v1653 = vld [vmem:[%s636 + $0x38] sm:$0xff]
        %v1654 = vld [vmem:[%s636 + $0x40] sm:$0xff]
        %v1655 = vld [vmem:[%s636 + $0x48] sm:$0xff]
        %v1656 = vld [vmem:[%s636 + $0x50] sm:$0xff]
        %v1657 = vld [vmem:[%s636 + $0x58] sm:$0xff]
        %v1658 = vld [vmem:[%s636 + $0x60] sm:$0xff]
        %v1659 = vld [vmem:[%s636 + $0x68] sm:$0xff]
        %v1660 = vld [vmem:[%s636 + $0x70] sm:$0xff]
        %v1661 = vld [vmem:[%s636 + $0x78] sm:$0xff]
        %v1662 = vld [vmem:[%s639] sm:$0x1]
        %v1664 = vlaneseq
        %v1665 = vshrl.u32 %v1664, 7
        %v1666 = vsub.s32 0, %v1665
        %v1667 = vrot.slane %v1662, %v1666
        %1669 = vmatprep.subr.mxu0 0.0
        %1670 = vmatpush1.msra.mxu0 %v1661
        %1671 = vmatprep.subr.mxu0 0.0
        %1672 = vmatpush1.msra.mxu0 %v1660
        %1673 = vmatprep.subr.mxu0 0.0
        %1674 = vmatpush1.msra.mxu0 %v1659
        %1675 = vmatprep.subr.mxu0 0.0
        %1676 = vmatpush1.msra.mxu0 %v1658
        %1677 = vmatprep.subr.mxu0 0.0
        %1678 = vmatpush1.msra.mxu0 %v1657
        %1679 = vmatprep.subr.mxu0 0.0
        %1680 = vmatpush1.msra.mxu0 %v1656
        %1681 = vmatprep.subr.mxu0 0.0
        %1682 = vmatpush1.msra.mxu0 %v1655
        %1683 = vmatprep.subr.mxu0 0.0
        %1684 = vmatpush1.msra.mxu0 %v1654
        %1685 = vmatprep.subr.mxu0 0.0
        %1686 = vmatpush1.msra.mxu0 %v1653
        %1687 = vmatprep.subr.mxu0 0.0
        %1688 = vmatpush1.msra.mxu0 %v1652
        %1689 = vmatprep.subr.mxu0 0.0
        %1690 = vmatpush1.msra.mxu0 %v1651
        %1691 = vmatprep.subr.mxu0 0.0
        %1692 = vmatpush1.msra.mxu0 %v1650
        %1693 = vmatprep.subr.mxu0 0.0
        %1694 = vmatpush1.msra.mxu0 %v1649
        %1695 = vmatprep.subr.mxu0 0.0
        %1696 = vmatpush1.msra.mxu0 %v1648
        %1697 = vmatprep.subr.mxu0 0.0
        %1698 = vmatpush1.msra.mxu0 %v1647
        %1699 = vmatprep.subr.mxu0 0.0
        %1700 = vmatpush1.msra.mxu0 %v1646
        %1701 = vmatprep.subr.mxu0 0.0
        %1702 = vmatpush2.msra.mxu0 0.0
        %1703 = vmatprep.subr.mxu0 0.0
        %1704 = vmatpush2.msra.mxu0 0.0
        %1705 = vmatprep.subr.mxu0 0.0
        %1706 = vmatpush2.msra.mxu0 0.0
        %1707 = vmatprep.subr.mxu0 0.0
        %1708 = vmatpush2.msra.mxu0 0.0
        %1709 = vmatprep.subr.mxu0 0.0
        %1710 = vmatpush2.msra.mxu0 0.0
        %1711 = vmatprep.subr.mxu0 0.0
        %1712 = vmatpush2.msra.mxu0 0.0
        %1713 = vmatprep.subr.mxu0 0.0
        %1714 = vmatpush2.msra.mxu0 0.0
        %1715 = vmatprep.subr.mxu0 0.0
        %1716 = vmatpush2.msra.mxu0 0.0
        %1717 = vmatprep.subr.mxu0 0.0
        %1718 = vmatpush2.msra.mxu0 0.0
        %1719 = vmatprep.subr.mxu0 0.0
        %1720 = vmatpush2.msra.mxu0 0.0
        %1721 = vmatprep.subr.mxu0 0.0
        %1722 = vmatpush2.msra.mxu0 0.0
        %1723 = vmatprep.subr.mxu0 0.0
        %1724 = vmatpush2.msra.mxu0 0.0
        %1725 = vmatprep.subr.mxu0 0.0
        %1726 = vmatpush2.msra.mxu0 0.0
        %1727 = vmatprep.subr.mxu0 0.0
        %1728 = vmatpush2.msra.mxu0 0.0
        %1729 = vmatprep.subr.mxu0 0.0
        %1730 = vmatpush2.msra.mxu0 0.0
        %1731 = vmatprep.subr.mxu0 0.0
        %1732 = vmatpush2.msra.mxu0 0.0
        %1733 = vmatprep.mubr.f32.mxu0 0.0
        %1734 = vmatmul.mubr.f32.gmra.mxu0 %v1645
        %v1735 = vpop.f32.mrf.mxu0
        %v1736 = vadd.f32 %v1667, %v1735
        %v1737 = vpop.f32.mrf.mxu0
        %1738 = vdwg.mxu0
        %v1739 = vadd.f32 %v1524, %v1736
        %1740 = vst.msk [vmem:[#allocation2] sm:$0xff] %vm650, %v1739
        %p1741 = scmp.eq.s32.totalorder %s32, 1
        // Predicated region
        $region77: #{tpu_custom_call.1} parent=71 // pred_check
          %p1742 = pneg %p1741
        $region78: #{tpu_custom_call.1} parent=71 // pred_check_branch
          %1744 = sbr.rel (%p1742) target = $region80
        $region79: #{tpu_custom_call.1} parent=71 // pred_region
          %1745 = vst.msk [vmem:[%s591] sm:$0xff] %vm650, %v1739
        $region80: #{tpu_custom_call.1} parent=71 // pred_fallthru
          _
        %s1746 = sand.u32 %s385, 1
        %s1747 = scalar_lea.sflag [#allocation4], %s1746
        %s1748 = sand.u32 %s385, 1
        %s1749 = smul.addr %s1748, 8
        %s1750 = scalar_lea.vmem [#allocation3], %s1749
        // Predicated region
        $region81: #{tpu_custom_call.1} parent=71 // pred_check
          %p1751 = pneg %p395
        $region82: #{tpu_custom_call.1} parent=71 // pred_check_branch
          %1753 = sbr.rel (%p1751) target = $region84
        $region83: #{tpu_custom_call.1} parent=71 // pred_region
          %s1755 = ssub.s32 128, 128
          %1756 = vsyncadd %s1747, %s1755
          %s1757 = smul.addr %s31, 128
          %s1758 = scalar_lea.hbm %s13, %s1757
          %s1760 = sshll.u32 %s1750, 4
          %s1761 = int_to_ptr.vmem [resolvable:$true] %s1760
          %1763 = dma.vmem_to_hbm [thread:$0]  %s1761, 128, %s1758, %s1747
        $region84: #{tpu_custom_call.1} parent=71 // pred_fallthru
          _
      $region72: #{tpu_custom_call.1} parent=5 // pred_fallthru
        _
      %p1764 = scmp.le.s32.totalorder 2, %s22
      // Predicated region
      $region85: #{tpu_custom_call.1} parent=5 // pred_check
        %p1765 = pneg %p1764
      $region86: #{tpu_custom_call.1} parent=5 // pred_check_branch
        %1767 = sbr.rel (%p1765) target = $region88
      $region87: #{tpu_custom_call.1} parent=5 // pred_region
        %s1768 = ssub.s32 %s22, 2
        // Predicated region
        $region89: #{tpu_custom_call.1} parent=87 // pred_check
          %p1769 = pneg %p401
        $region90: #{tpu_custom_call.1} parent=87 // pred_check_branch
          %1771 = sbr.rel (%p1769) target = $region92
        $region91: #{tpu_custom_call.1} parent=87 // pred_region
          %s1772 = sand.u32 %s386, 1
          %s1773 = scalar_lea.sflag [#allocation4], %s1772
          %s1774 = sand.u32 %s386, 1
          %s1775 = smul.addr %s1774, 8
          %s1776 = scalar_lea.vmem [#allocation3], %s1775
          %1777 = dma.done %s1773, 128
        $region92: #{tpu_custom_call.1} parent=87 // pred_fallthru
          _
      $region88: #{tpu_custom_call.1} parent=5 // pred_fallthru
        _
    $region6: #{tpu_custom_call.1} parent=1 // loop_footer
      %s26 = sadd.s32 1, %s22
    $region7: #{tpu_custom_call.1} parent=1 // loop_footer_branch
      %21 = sbr.rel target = $region3
    $region8: #{tpu_custom_call.1} parent=1 // loop_exit
      _
    %1778 = vsyncpa [#allocation4], 1
    %s1779 = scalar_lea.sflag [#allocation4], 1
    %1780 = vsyncpa %s1779, 1

</llo_original>
